<compile_context>
chip_gen: v7x
topology: tpu7x:2x2x1
jax: 0.10.0
libtpu: 0.0.40
codegen_flags: <defaults>
</compile_context>

<pallas_src>
import functools

import jax
import jax.numpy as jnp
from jax import lax
from jax.experimental import pallas as pl
from jax.experimental.pallas import tpu as pltpu


# ----------------------------------------------------------------------------
# Fused kernel: 1x1 conv/BN/PReLU -> 3x3 depthwise stride-2 conv/BN/PReLU
#               -> 1x1 conv/BN, one image per grid step.
# ----------------------------------------------------------------------------
def _fused_depth_wise_kernel(x_ref, w1_ref, b1_ref, a1_ref,
                             wdw_ref, b2_ref, a2_ref,
                             w3_ref, b3_ref,
                             o_ref, y1ph_ref,
                             *, Ho, Wo, tq1, tq2, mxu_dtype):
    """Refs (per grid step / image):
      x_ref   : (4, Ho*Wo, Cin)   stride-2 phases of the input (flat spatial);
                                  phase q = 2*qu+qv, row r*Wo+s = x[2r+qu,2s+qv]
      w1_ref  : (Cin, C1)         1x1 weights with BN1 scale folded in
      b1_ref, a1_ref : (1, C1)    BN1 bias, PReLU1 slope
      wdw_ref : (9, C2)           3x3 depthwise taps (kh*3+kw) w/ BN2 scale
      b2_ref, a2_ref : (1, C2)    BN2 bias, PReLU2 slope
      w3_ref  : (C2, C3)          projection weights with BN3 scale folded in
      b3_ref  : (1, C3)           BN3 bias
      o_ref   : (Ho*Wo, C3)       output block (flat spatial)
      y1ph_ref: (2, 2, Ho+1, Wo+1, C1)  VMEM scratch: zero-halo, phase-split
                                        layout of the PW1 output.
    """
    Cin = x_ref.shape[-1]
    C1 = w1_ref.shape[-1]
    C2 = wdw_ref.shape[-1]
    C3 = w3_ref.shape[-1]

    # ---- hoisted, loop-invariant parameter loads ----------------------------
    w1v = w1_ref[...].astype(mxu_dtype)
    b1v = b1_ref[...]
    a1v = a1_ref[...]
    wdw_all = wdw_ref[...]                       # (9, C2), f32
    taps = [wdw_all[k:k + 1, :] for k in range(9)]   # each (1, C2)
    b2v = b2_ref[...]
    a2v = a2_ref[...]
    w3v = w3_ref[...].astype(mxu_dtype)
    b3v = b3_ref[...]

    # ---- zero ONLY the padded halo of the scratch (interior is fully --------
    # ---- overwritten by stage 1 every step) ---------------------------------
    zr = jnp.zeros((1, Wo + 1, C1), jnp.float32)
    zc = jnp.zeros((Ho + 1, 1, C1), jnp.float32)
    for pv in range(2):
        y1ph_ref[0, pv, 0:1, :, :] = zr                 # padded row 0
        y1ph_ref[1, pv, Ho:Ho + 1, :, :] = zr           # padded row 2Ho+1
    for pu in range(2):
        y1ph_ref[pu, 0, :, 0:1, :] = zc                 # padded col 0
        y1ph_ref[pu, 1, :, Wo:Wo + 1, :] = zc           # padded col 2Wo+1

    # ---- Stage 1: 1x1 conv (+folded BN1) + PReLU, written phase-split -------
    # One fused matmul over all 4 stride phases per row chunk; the result rows
    # are phase-major so each phase is a contiguous, aligned row slice.
    S1 = tq1 * Wo
    n1 = Ho // tq1
    g1 = S1 & -S1                                        # largest pow2 divisor

    def pw1_body(c, carry):
        s0 = c * S1
        if g1 > 1:
            s0 = pl.multiple_of(s0, g1)
        xq = x_ref[:, pl.ds(s0, S1), :]                  # (4, S1, Cin)
        xm = xq.reshape(4 * S1, Cin).astype(mxu_dtype)
        y = jnp.dot(xm, w1v, preferred_element_type=jnp.float32)
        y = y + b1v
        y = jnp.where(y >= 0.0, y, y * a1v)              # PReLU1, (4*S1, C1)
        r0 = c * tq1
        # Padded coordinate of y1[h, w] is (h+1, w+1); with h = 2r+qu it lands
        # in padded phase (qu+1)%2 at row offset (qu+1)//2 (same for columns).
        for qu in range(2):
            pu, roff = (qu + 1) % 2, (qu + 1) // 2
            for qv in range(2):
                pv, coff = (qv + 1) % 2, (qv + 1) // 2
                q = 2 * qu + qv
                yq = y[q * S1:(q + 1) * S1, :].reshape(tq1, Wo, C1)
                y1ph_ref[pu, pv, pl.ds(roff + r0, tq1),
                         coff:coff + Wo, :] = yq
        return carry

    lax.fori_loop(0, n1, pw1_body, 0)

    # ---- Stage 2+3: depthwise 3x3 stride 2 (+BN2) + PReLU, 1x1 proj (+BN3) --
    # Visible fori_loop over output-row chunks keeps the f32 accumulator small.
    S2 = tq2 * Wo
    n2 = Ho // tq2
    g2 = S2 & -S2

    def dw_proj_body(c, carry):
        i0 = c * tq2
        acc = jnp.zeros((tq2, Wo, C2), jnp.float32)
        for kh in range(3):
            pu = kh % 2
            r = i0 + kh // 2
            # Load the two needed phase planes ONCE per kernel row; the three
            # taps are cheap value slices of these (no per-tap VMEM reads).
            pa = y1ph_ref[pu, 0, pl.ds(r, tq2), :, :]    # (tq2, Wo+1, C1)
            pb = y1ph_ref[pu, 1, pl.ds(r, tq2), :, :]    # (tq2, Wo+1, C1)
            acc = acc + pa[:, 0:Wo, :] * taps[kh * 3 + 0]      # kw = 0
            acc = acc + pb[:, 0:Wo, :] * taps[kh * 3 + 1]      # kw = 1
            acc = acc + pa[:, 1:Wo + 1, :] * taps[kh * 3 + 2]  # kw = 2
        y2 = acc + b2v
        y2 = jnp.where(y2 >= 0.0, y2, y2 * a2v)          # PReLU2
        # Linear_block: 1x1 conv + BN only (no PReLU here).
        y2m = y2.reshape(S2, C2).astype(mxu_dtype)
        y3 = jnp.dot(y2m, w3v, preferred_element_type=jnp.float32) + b3v
        off = i0 * Wo
        if g2 > 1:
            off = pl.multiple_of(off, g2)
        o_ref[pl.ds(off, S2), :] = y3.astype(o_ref.dtype)
        return carry

    lax.fori_loop(0, n2, dw_proj_body, 0)


# ----------------------------------------------------------------------------
# Wrapper helpers.
# ----------------------------------------------------------------------------
def fold_bn(gamma, beta, mean, var, eps=1e-5):
    scale = gamma / jnp.sqrt(var + eps)
    bias = beta - mean * scale
    return scale, bias


def _row_chunk(h, target):
    """Largest divisor of h that is <= target (>=1)."""
    t = max(1, min(h, int(target)))
    while h % t:
        t -= 1
    return t


def _tiled_bytes(shape, dtype):
    """VMEM bytes of `shape` after (sublane, lane) tile padding."""
    itemsize = jnp.dtype(dtype).itemsize
    sub = 8 * max(1, 4 // itemsize)          # 8 for f32, 16 for bf16, 32 for i8
    s = list(shape) if len(shape) else [1]
    s[-1] = -(-s[-1] // 128) * 128
    if len(s) >= 2:
        s[-2] = -(-s[-2] // sub) * sub
    n = 1
    for d in s:
        n *= int(d)
    return n * itemsize


# ----------------------------------------------------------------------------
# Wrapper: parameter folding, input phase split, pallas_call.
# ----------------------------------------------------------------------------
def depth_wise_forward(x_nchw, p, residual=False,
                       kernel=(3, 3), stride=(2, 2), padding=(1, 1),
                       mxu_dtype=jnp.float32):
    """Forward pass of Depth_Wise. Takes/returns NCHW to match PyTorch.

    mxu_dtype: dtype fed to the MXU matmuls (f32 accumulate always). Use
    jnp.bfloat16 on v6e/v7x for peak MXU rate and halved activation DMA.
    """
    if kernel != (3, 3) or stride != (2, 2) or padding != (1, 1):
        # TODO(synk): kernel specialised to kernel=(3,3), stride=(2,2), pad=(1,1).
        raise NotImplementedError("specialised to kernel=3x3, stride=2, pad=1")
    if residual:
        # TODO(synk): residual=True requires stride=(1,1); shapes cannot match here.
        raise NotImplementedError("residual=True requires stride=(1,1)")

    N, Cin, H, W = x_nchw.shape
    if H % 2 or W % 2:
        raise NotImplementedError("spatial dims must be even for the stride-2 "
                                  "phase split")
    C1 = p["w1"].shape[1]
    C2 = p["w_dw"].shape[2]
    C3 = p["w3"].shape[1]
    assert p["w1"].shape[0] == Cin and C2 == C1 and p["w3"].shape[0] == C2, \
        "Depth_Wise expects c1_out == c2_in == c2_out == c3_in (depthwise mult 1)"
    Ho, Wo = H // 2, W // 2

    # Fold BN (inference) scales directly into the conv weights.
    s1, b1 = fold_bn(p["bn1_gamma"], p["bn1_beta"], p["bn1_mean"], p["bn1_var"])
    s2, b2 = fold_bn(p["bn2_gamma"], p["bn2_beta"], p["bn2_mean"], p["bn2_var"])
    s3, b3 = fold_bn(p["bn3_gamma"], p["bn3_beta"], p["bn3_mean"], p["bn3_var"])
    w1f = (p["w1"] * s1[None, :]).astype(mxu_dtype)
    wdwf = (p["w_dw"] * s2[None, None, :]).reshape(9, C2).astype(jnp.float32)
    w3f = (p["w3"] * s3[None, :]).astype(mxu_dtype)

    # Stride-2 phase split of the INPUT (flat spatial), fused by XLA with the
    # NCHW layout change — one copy of the smallest tensor, no pad, and no
    # expanded activation ever hits HBM.
    #   xph[n*4 + 2*qu + qv, r*Wo + s, c] = x[n, c, 2r+qu, 2s+qv]
    xph = (x_nchw.reshape(N, Cin, Ho, 2, Wo, 2)
           .transpose(0, 3, 5, 2, 4, 1)
           .reshape(N * 4, Ho * Wo, Cin)).astype(mxu_dtype)

    # Row-chunk sizes from a vreg budget (acc ~<= 16 vregs at C2=128).
    lane_tiles = -(-C2 // 128)
    tq2 = _row_chunk(Ho, max(1, 128 // max(Wo * lane_tiles, 1)))
    tq1 = _row_chunk(Ho, max(1, 128 // max(Wo, 1)))

    # Tiling-aware VMEM budget: (8,128)/dtype padding on every buffer,
    # double-buffered in/out + scratch + weights.
    vmem_limit = 32 * 1024 * 1024
    vmem_est = (
        2 * _tiled_bytes((4, Ho * Wo, Cin), xph.dtype)
        + 2 * _tiled_bytes((Ho * Wo, C3), x_nchw.dtype)
        + _tiled_bytes((2, 2, Ho + 1, Wo + 1, C1), jnp.float32)
        + 2 * (_tiled_bytes((Cin, C1), w1f.dtype)
               + _tiled_bytes((9, C2), jnp.float32)
               + _tiled_bytes((C2, C3), w3f.dtype)
               + 5 * _tiled_bytes((1, max(C1, C2, C3)), jnp.float32)))
    if vmem_est > vmem_limit - 4 * 1024 * 1024:
        # TODO(synk): tile the grid over output-row bands (recomputing a 1-row
        # PW1 halo per band) for very large H*W*C / v7x's smaller VMEM.
        raise NotImplementedError("per-image working set too large for VMEM")

    kern = functools.partial(_fused_depth_wise_kernel, Ho=Ho, Wo=Wo,
                             tq1=tq1, tq2=tq2, mxu_dtype=mxu_dtype)
    out = pl.pallas_call(
        kern,
        out_shape=jax.ShapeDtypeStruct((N, Ho * Wo, C3), x_nchw.dtype),
        grid=(N,),
        in_specs=[
            pl.BlockSpec((4, Ho * Wo, Cin), lambda n: (n, 0, 0)),
            pl.BlockSpec((Cin, C1), lambda n: (0, 0)),
            pl.BlockSpec((1, C1), lambda n: (0, 0)),
            pl.BlockSpec((1, C1), lambda n: (0, 0)),
            pl.BlockSpec((9, C2), lambda n: (0, 0)),
            pl.BlockSpec((1, C2), lambda n: (0, 0)),
            pl.BlockSpec((1, C2), lambda n: (0, 0)),
            pl.BlockSpec((C2, C3), lambda n: (0, 0)),
            pl.BlockSpec((1, C3), lambda n: (0, 0)),
        ],
        out_specs=pl.BlockSpec((None, Ho * Wo, C3), lambda n: (n, 0, 0)),
        scratch_shapes=[pltpu.VMEM((2, 2, Ho + 1, Wo + 1, C1), jnp.float32)],
        compiler_params=pltpu.CompilerParams(
            dimension_semantics=("parallel",),
            vmem_limit_bytes=vmem_limit),
    )(xph, w1f, b1.reshape(1, C1), p["prelu1"].reshape(1, C1),
      wdwf, b2.reshape(1, C2), p["prelu2"].reshape(1, C2),
      w3f, b3.reshape(1, C3))

    # TODO(synk): in a fused network keep this NHWC-flat layout end-to-end; the
    # reshape+transpose below exists only to match the PyTorch NCHW API.
    out = out.reshape(N, Ho, Wo, C3)
    return jnp.transpose(out, (0, 3, 1, 2))


# ----------------------------------------------------------------------------
# Pure-JAX reference (matches the PyTorch module with folded BN) + init.
# ----------------------------------------------------------------------------
def ref_forward(x_nchw, p, residual=False,
                kernel=(3, 3), stride=(2, 2), padding=(1, 1)):
    x = jnp.transpose(x_nchw, (0, 2, 3, 1))
    s1, b1 = fold_bn(p["bn1_gamma"], p["bn1_beta"], p["bn1_mean"], p["bn1_var"])
    s2, b2 = fold_bn(p["bn2_gamma"], p["bn2_beta"], p["bn2_mean"], p["bn2_var"])
    s3, b3 = fold_bn(p["bn3_gamma"], p["bn3_beta"], p["bn3_mean"], p["bn3_var"])
    prelu = lambda v, a: jnp.where(v >= 0, v, v * a)
    y = prelu(jnp.einsum("nhwc,cd->nhwd", x, p["w1"]) * s1 + b1, p["prelu1"])
    KH, KW = kernel
    C = y.shape[-1]
    y = lax.conv_general_dilated(
        y, p["w_dw"].reshape(KH, KW, 1, C),
        window_strides=stride,
        padding=((padding[0], padding[0]), (padding[1], padding[1])),
        dimension_numbers=("NHWC", "HWIO", "NHWC"),
        feature_group_count=C)
    y = prelu(y * s2 + b2, p["prelu2"])
    y = jnp.einsum("nhwc,cd->nhwd", y, p["w3"]) * s3 + b3
    if residual:
        y = y + x
    return jnp.transpose(y, (0, 3, 1, 2))


def init_params(key, c1, c2, c3, kernel=(3, 3)):
    c1_in, c1_out = c1
    c2_in, c2_out = c2
    c3_in, c3_out = c3
    KH, KW = kernel
    ks = jax.random.split(key, 8)

    def bn_init(k, c):
        k1, k2, k3, k4 = jax.random.split(k, 4)
        return dict(
            gamma=jax.random.uniform(k1, (c,), jnp.float32, 0.8, 1.2),
            beta=0.1 * jax.random.normal(k2, (c,), jnp.float32),
            mean=0.1 * jax.random.normal(k3, (c,), jnp.float32),
            var=jax.random.uniform(k4, (c,), jnp.float32, 0.5, 1.5),
        )

    p = {
        "w1": 0.2 * jax.random.normal(ks[0], (c1_in, c1_out), jnp.float32),
        "w_dw": 0.2 * jax.random.normal(ks[1], (KH, KW, c2_out), jnp.float32),
        "w3": 0.2 * jax.random.normal(ks[2], (c3_in, c3_out), jnp.float32),
        # randomized per-channel PReLU slopes (catches channel-broadcast bugs)
        "prelu1": jax.random.uniform(ks[6], (c1_out,), jnp.float32, 0.1, 0.4),
        "prelu2": jax.random.uniform(ks[7], (c2_out,), jnp.float32, 0.1, 0.4),
    }
    for name, k, c in (("bn1", ks[3], c1_out), ("bn2", ks[4], c2_out),
                       ("bn3", ks[5], c3_out)):
        for kk, v in bn_init(k, c).items():
            p[f"{name}_{kk}"] = v
    return p


if __name__ == "__main__":
    key = jax.random.PRNGKey(0)
    kp, kx = jax.random.split(key)

    # Depth_Wise(c1=(4, 8), c2=(8, 8), c3=(8, 16), kernel=(3,3), stride=(2,2))
    N, H, W = 2, 16, 16
    c1, c2, c3 = (4, 8), (8, 8), (8, 16)
    params = init_params(kp, c1, c2, c3, kernel=(3, 3))
    x = jax.random.normal(kx, (N, c1[0], H, W), jnp.float32)   # NCHW like PyTorch

    fwd = jax.jit(functools.partial(depth_wise_forward, residual=False))
    out = jax.block_until_ready(fwd(x, params))

    assert out.shape == (N, c3[1], H // 2, W // 2), out.shape
    ref = ref_forward(x, params, residual=False)
    if not jnp.allclose(out, ref, rtol=1e-4, atol=1e-4):
        raise AssertionError(
            f"mismatch: max abs err = {float(jnp.max(jnp.abs(out - ref)))}")
    print("KERNEL_OK")
</pallas_src>

<mosaic_0001>
module attributes {stable_mosaic.version = 11 : i64} {
  func.func @_fused_depth_wise_kernel(%arg0: i32, %arg1: memref<4x64x4xf32, #tpu.memory_space<vmem>>, %arg2: memref<4x8xf32, #tpu.memory_space<vmem>>, %arg3: memref<1x8xf32, #tpu.memory_space<vmem>>, %arg4: memref<1x8xf32, #tpu.memory_space<vmem>>, %arg5: memref<9x8xf32, #tpu.memory_space<vmem>>, %arg6: memref<1x8xf32, #tpu.memory_space<vmem>>, %arg7: memref<1x8xf32, #tpu.memory_space<vmem>>, %arg8: memref<8x16xf32, #tpu.memory_space<vmem>>, %arg9: memref<1x16xf32, #tpu.memory_space<vmem>>, %arg10: memref<1x64x16xf32, #tpu.memory_space<vmem>>, %arg11: memref<2x2x9x9x8xf32, #tpu.memory_space<vmem>>) attributes {dimension_semantics = [#tpu.dimension_semantics<parallel>], iteration_bounds = array<i64: 2>, scalar_prefetch = 0 : i64, scratch_operands = 1 : i64, tpu.core_type = #tpu.core_type<tc>, window_params = [{transform_indices = @transform_0, window_bounds = array<i64: 4, 64, 4>}, {pipeline_mode = #tpu.pipeline_mode<synchronous>, transform_indices = @transform_1, window_bounds = array<i64: 4, 8>}, {pipeline_mode = #tpu.pipeline_mode<synchronous>, transform_indices = @transform_2, window_bounds = array<i64: 1, 8>}, {pipeline_mode = #tpu.pipeline_mode<synchronous>, transform_indices = @transform_3, window_bounds = array<i64: 1, 8>}, {pipeline_mode = #tpu.pipeline_mode<synchronous>, transform_indices = @transform_4, window_bounds = array<i64: 9, 8>}, {pipeline_mode = #tpu.pipeline_mode<synchronous>, transform_indices = @transform_5, window_bounds = array<i64: 1, 8>}, {pipeline_mode = #tpu.pipeline_mode<synchronous>, transform_indices = @transform_6, window_bounds = array<i64: 1, 8>}, {pipeline_mode = #tpu.pipeline_mode<synchronous>, transform_indices = @transform_7, window_bounds = array<i64: 8, 16>}, {pipeline_mode = #tpu.pipeline_mode<synchronous>, transform_indices = @transform_8, window_bounds = array<i64: 1, 16>}, {transform_indices = @transform_9, window_bounds = array<i64: 1, 64, 16>}]} {
    %c0 = arith.constant 0 : index
    %c0_0 = arith.constant 0 : index
    %0 = vector.load %arg2[%c0, %c0_0] : memref<4x8xf32, #tpu.memory_space<vmem>>, vector<4x8xf32>
    %c0_1 = arith.constant 0 : index
    %c0_2 = arith.constant 0 : index
    %1 = vector.load %arg3[%c0_1, %c0_2] : memref<1x8xf32, #tpu.memory_space<vmem>>, vector<1x8xf32>
    %c0_3 = arith.constant 0 : index
    %c0_4 = arith.constant 0 : index
    %2 = vector.load %arg4[%c0_3, %c0_4] : memref<1x8xf32, #tpu.memory_space<vmem>>, vector<1x8xf32>
    %c0_5 = arith.constant 0 : index
    %c0_6 = arith.constant 0 : index
    %3 = vector.load %arg5[%c0_5, %c0_6] : memref<9x8xf32, #tpu.memory_space<vmem>>, vector<9x8xf32>
    %4 = vector.extract_strided_slice %3 {offsets = [0, 0], sizes = [1, 8], strides = [1, 1]} : vector<9x8xf32> to vector<1x8xf32>
    %5 = vector.extract_strided_slice %3 {offsets = [1, 0], sizes = [1, 8], strides = [1, 1]} : vector<9x8xf32> to vector<1x8xf32>
    %6 = vector.extract_strided_slice %3 {offsets = [2, 0], sizes = [1, 8], strides = [1, 1]} : vector<9x8xf32> to vector<1x8xf32>
    %7 = vector.extract_strided_slice %3 {offsets = [3, 0], sizes = [1, 8], strides = [1, 1]} : vector<9x8xf32> to vector<1x8xf32>
    %8 = vector.extract_strided_slice %3 {offsets = [4, 0], sizes = [1, 8], strides = [1, 1]} : vector<9x8xf32> to vector<1x8xf32>
    %9 = vector.extract_strided_slice %3 {offsets = [5, 0], sizes = [1, 8], strides = [1, 1]} : vector<9x8xf32> to vector<1x8xf32>
    %10 = vector.extract_strided_slice %3 {offsets = [6, 0], sizes = [1, 8], strides = [1, 1]} : vector<9x8xf32> to vector<1x8xf32>
    %11 = vector.extract_strided_slice %3 {offsets = [7, 0], sizes = [1, 8], strides = [1, 1]} : vector<9x8xf32> to vector<1x8xf32>
    %12 = vector.extract_strided_slice %3 {offsets = [8, 0], sizes = [1, 8], strides = [1, 1]} : vector<9x8xf32> to vector<1x8xf32>
    %c0_7 = arith.constant 0 : index
    %c0_8 = arith.constant 0 : index
    %13 = vector.load %arg6[%c0_7, %c0_8] : memref<1x8xf32, #tpu.memory_space<vmem>>, vector<1x8xf32>
    %c0_9 = arith.constant 0 : index
    %c0_10 = arith.constant 0 : index
    %14 = vector.load %arg7[%c0_9, %c0_10] : memref<1x8xf32, #tpu.memory_space<vmem>>, vector<1x8xf32>
    %c0_11 = arith.constant 0 : index
    %c0_12 = arith.constant 0 : index
    %15 = vector.load %arg8[%c0_11, %c0_12] : memref<8x16xf32, #tpu.memory_space<vmem>>, vector<8x16xf32>
    %c0_13 = arith.constant 0 : index
    %c0_14 = arith.constant 0 : index
    %16 = vector.load %arg9[%c0_13, %c0_14] : memref<1x16xf32, #tpu.memory_space<vmem>>, vector<1x16xf32>
    %cst = arith.constant 0.000000e+00 : f32
    %17 = vector.broadcast %cst : f32 to vector<1x9x8xf32>
    %cst_15 = arith.constant 0.000000e+00 : f32
    %18 = vector.broadcast %cst_15 : f32 to vector<9x1x8xf32>
    %c0_16 = arith.constant 0 : index
    %c0_17 = arith.constant 0 : index
    %c0_18 = arith.constant 0 : index
    %c0_19 = arith.constant 0 : index
    %c0_20 = arith.constant 0 : index
    %19 = vector.load %arg11[%c0_16, %c0_17, %c0_18, %c0_19, %c0_20] : memref<2x2x9x9x8xf32, #tpu.memory_space<vmem>>, vector<1x1x1x9x8xf32>
    %20 = vector.shape_cast %19 : vector<1x1x1x9x8xf32> to vector<1x9x8xf32>
    %21 = vector.shape_cast %17 : vector<1x9x8xf32> to vector<1x1x1x9x8xf32>
    tpu.vector_store %arg11[%c0_16, %c0_17, %c0_18, %c0_19, %c0_20], %21 {strides = array<i32>} : memref<2x2x9x9x8xf32, #tpu.memory_space<vmem>>, vector<1x1x1x9x8xf32>,
    %c1 = arith.constant 1 : index
    %c0_21 = arith.constant 0 : index
    %c8 = arith.constant 8 : index
    %c0_22 = arith.constant 0 : index
    %c0_23 = arith.constant 0 : index
    %22 = vector.load %arg11[%c1, %c0_21, %c8, %c0_22, %c0_23] : memref<2x2x9x9x8xf32, #tpu.memory_space<vmem>>, vector<1x1x1x9x8xf32>
    %23 = vector.shape_cast %22 : vector<1x1x1x9x8xf32> to vector<1x9x8xf32>
    %24 = vector.shape_cast %17 : vector<1x9x8xf32> to vector<1x1x1x9x8xf32>
    tpu.vector_store %arg11[%c1, %c0_21, %c8, %c0_22, %c0_23], %24 {strides = array<i32>} : memref<2x2x9x9x8xf32, #tpu.memory_space<vmem>>, vector<1x1x1x9x8xf32>,
    %c0_24 = arith.constant 0 : index
    %c1_25 = arith.constant 1 : index
    %c0_26 = arith.constant 0 : index
    %c0_27 = arith.constant 0 : index
    %c0_28 = arith.constant 0 : index
    %25 = vector.load %arg11[%c0_24, %c1_25, %c0_26, %c0_27, %c0_28] : memref<2x2x9x9x8xf32, #tpu.memory_space<vmem>>, vector<1x1x1x9x8xf32>
    %26 = vector.shape_cast %25 : vector<1x1x1x9x8xf32> to vector<1x9x8xf32>
    %27 = vector.shape_cast %17 : vector<1x9x8xf32> to vector<1x1x1x9x8xf32>
    tpu.vector_store %arg11[%c0_24, %c1_25, %c0_26, %c0_27, %c0_28], %27 {strides = array<i32>} : memref<2x2x9x9x8xf32, #tpu.memory_space<vmem>>, vector<1x1x1x9x8xf32>,
    %c1_29 = arith.constant 1 : index
    %c1_30 = arith.constant 1 : index
    %c8_31 = arith.constant 8 : index
    %c0_32 = arith.constant 0 : index
    %c0_33 = arith.constant 0 : index
    %28 = vector.load %arg11[%c1_29, %c1_30, %c8_31, %c0_32, %c0_33] : memref<2x2x9x9x8xf32, #tpu.memory_space<vmem>>, vector<1x1x1x9x8xf32>
    %29 = vector.shape_cast %28 : vector<1x1x1x9x8xf32> to vector<1x9x8xf32>
    %30 = vector.shape_cast %17 : vector<1x9x8xf32> to vector<1x1x1x9x8xf32>
    tpu.vector_store %arg11[%c1_29, %c1_30, %c8_31, %c0_32, %c0_33], %30 {strides = array<i32>} : memref<2x2x9x9x8xf32, #tpu.memory_space<vmem>>, vector<1x1x1x9x8xf32>,
    %c0_34 = arith.constant 0 : index
    %c0_35 = arith.constant 0 : index
    %c0_36 = arith.constant 0 : index
    %c0_37 = arith.constant 0 : index
    %c0_38 = arith.constant 0 : index
    %31 = vector.load %arg11[%c0_34, %c0_35, %c0_36, %c0_37, %c0_38] : memref<2x2x9x9x8xf32, #tpu.memory_space<vmem>>, vector<1x1x9x1x8xf32>
    %32 = vector.shape_cast %31 : vector<1x1x9x1x8xf32> to vector<9x1x8xf32>
    %33 = vector.shape_cast %18 : vector<9x1x8xf32> to vector<1x1x9x1x8xf32>
    tpu.vector_store %arg11[%c0_34, %c0_35, %c0_36, %c0_37, %c0_38], %33 {strides = array<i32>} : memref<2x2x9x9x8xf32, #tpu.memory_space<vmem>>, vector<1x1x9x1x8xf32>,
    %c0_39 = arith.constant 0 : index
    %c1_40 = arith.constant 1 : index
    %c0_41 = arith.constant 0 : index
    %c8_42 = arith.constant 8 : index
    %c0_43 = arith.constant 0 : index
    %34 = vector.load %arg11[%c0_39, %c1_40, %c0_41, %c8_42, %c0_43] : memref<2x2x9x9x8xf32, #tpu.memory_space<vmem>>, vector<1x1x9x1x8xf32>
    %35 = vector.shape_cast %34 : vector<1x1x9x1x8xf32> to vector<9x1x8xf32>
    %36 = vector.shape_cast %18 : vector<9x1x8xf32> to vector<1x1x9x1x8xf32>
    tpu.vector_store %arg11[%c0_39, %c1_40, %c0_41, %c8_42, %c0_43], %36 {strides = array<i32>} : memref<2x2x9x9x8xf32, #tpu.memory_space<vmem>>, vector<1x1x9x1x8xf32>,
    %c1_44 = arith.constant 1 : index
    %c0_45 = arith.constant 0 : index
    %c0_46 = arith.constant 0 : index
    %c0_47 = arith.constant 0 : index
    %c0_48 = arith.constant 0 : index
    %37 = vector.load %arg11[%c1_44, %c0_45, %c0_46, %c0_47, %c0_48] : memref<2x2x9x9x8xf32, #tpu.memory_space<vmem>>, vector<1x1x9x1x8xf32>
    %38 = vector.shape_cast %37 : vector<1x1x9x1x8xf32> to vector<9x1x8xf32>
    %39 = vector.shape_cast %18 : vector<9x1x8xf32> to vector<1x1x9x1x8xf32>
    tpu.vector_store %arg11[%c1_44, %c0_45, %c0_46, %c0_47, %c0_48], %39 {strides = array<i32>} : memref<2x2x9x9x8xf32, #tpu.memory_space<vmem>>, vector<1x1x9x1x8xf32>,
    %c1_49 = arith.constant 1 : index
    %c1_50 = arith.constant 1 : index
    %c0_51 = arith.constant 0 : index
    %c8_52 = arith.constant 8 : index
    %c0_53 = arith.constant 0 : index
    %40 = vector.load %arg11[%c1_49, %c1_50, %c0_51, %c8_52, %c0_53] : memref<2x2x9x9x8xf32, #tpu.memory_space<vmem>>, vector<1x1x9x1x8xf32>
    %41 = vector.shape_cast %40 : vector<1x1x9x1x8xf32> to vector<9x1x8xf32>
    %42 = vector.shape_cast %18 : vector<9x1x8xf32> to vector<1x1x9x1x8xf32>
    tpu.vector_store %arg11[%c1_49, %c1_50, %c0_51, %c8_52, %c0_53], %42 {strides = array<i32>} : memref<2x2x9x9x8xf32, #tpu.memory_space<vmem>>, vector<1x1x9x1x8xf32>,
    %c0_i32 = arith.constant 0 : i32
    %c64_i32 = arith.constant 64 : i32
    %43 = arith.muli %c0_i32, %c64_i32 : i32
    %44 = tpu.assume_multiple %43, 64 : i32
    %c0_54 = arith.constant 0 : index
    %45 = arith.index_cast %44 : i32 to index
    %c0_55 = arith.constant 0 : index
    %46 = vector.load %arg1[%c0_54, %45, %c0_55] : memref<4x64x4xf32, #tpu.memory_space<vmem>>, vector<4x64x4xf32>
    %47 = vector.shape_cast %46 : vector<4x64x4xf32> to vector<256x4xf32>
    %cst_56 = arith.constant dense<0.000000e+00> : vector<256x8xf32>
    %48 = tpu.matmul %47, %0, %cst_56 {dimension_numbers = #tpu.dot_dimension_numbers<[1], [0], [0], [1], [0, 0, 1, 1], [], []>} : vector<256x4xf32>, vector<4x8xf32>, vector<256x8xf32> -> vector<256x8xf32>
    %49 = vector.broadcast %1 : vector<1x8xf32> to vector<256x8xf32>
    %50 = arith.addf %48, %49 : vector<256x8xf32>
    %cst_57 = arith.constant 0.000000e+00 : f32
    %51 = vector.broadcast %cst_57 : f32 to vector<256x8xf32>
    %52 = arith.cmpf oge, %50, %51 : vector<256x8xf32>
    %53 = vector.broadcast %2 : vector<1x8xf32> to vector<256x8xf32>
    %54 = arith.mulf %50, %53 : vector<256x8xf32>
    %55 = arith.select %52, %50, %54 : vector<256x8xi1>, vector<256x8xf32>
    %c8_i32 = arith.constant 8 : i32
    %56 = arith.muli %c0_i32, %c8_i32 : i32
    %57 = vector.extract_strided_slice %55 {offsets = [0, 0], sizes = [64, 8], strides = [1, 1]} : vector<256x8xf32> to vector<64x8xf32>
    %58 = vector.shape_cast %57 : vector<64x8xf32> to vector<8x8x8xf32>
    %c0_i32_58 = arith.constant 0 : i32
    %59 = arith.addi %c0_i32_58, %56 : i32
    %c1_59 = arith.constant 1 : index
    %c1_60 = arith.constant 1 : index
    %60 = arith.index_cast %59 : i32 to index
    %c0_61 = arith.constant 0 : index
    %c0_62 = arith.constant 0 : index
    %61 = vector.load %arg11[%c1_59, %c1_60, %60, %c0_61, %c0_62] : memref<2x2x9x9x8xf32, #tpu.memory_space<vmem>>, vector<1x1x8x8x8xf32>
    %62 = vector.shape_cast %61 : vector<1x1x8x8x8xf32> to vector<8x8x8xf32>
    %63 = vector.shape_cast %58 : vector<8x8x8xf32> to vector<1x1x8x8x8xf32>
    tpu.vector_store %arg11[%c1_59, %c1_60, %60, %c0_61, %c0_62], %63 {strides = array<i32>} : memref<2x2x9x9x8xf32, #tpu.memory_space<vmem>>, vector<1x1x8x8x8xf32>,
    %64 = vector.extract_strided_slice %55 {offsets = [64, 0], sizes = [64, 8], strides = [1, 1]} : vector<256x8xf32> to vector<64x8xf32>
    %65 = vector.shape_cast %64 : vector<64x8xf32> to vector<8x8x8xf32>
    %c0_i32_63 = arith.constant 0 : i32
    %66 = arith.addi %c0_i32_63, %56 : i32
    %c1_64 = arith.constant 1 : index
    %c0_65 = arith.constant 0 : index
    %67 = arith.index_cast %66 : i32 to index
    %c1_66 = arith.constant 1 : index
    %c0_67 = arith.constant 0 : index
    %68 = vector.load %arg11[%c1_64, %c0_65, %67, %c1_66, %c0_67] : memref<2x2x9x9x8xf32, #tpu.memory_space<vmem>>, vector<1x1x8x8x8xf32>
    %69 = vector.shape_cast %68 : vector<1x1x8x8x8xf32> to vector<8x8x8xf32>
    %70 = vector.shape_cast %65 : vector<8x8x8xf32> to vector<1x1x8x8x8xf32>
    tpu.vector_store %arg11[%c1_64, %c0_65, %67, %c1_66, %c0_67], %70 {strides = array<i32>} : memref<2x2x9x9x8xf32, #tpu.memory_space<vmem>>, vector<1x1x8x8x8xf32>,
    %71 = vector.extract_strided_slice %55 {offsets = [128, 0], sizes = [64, 8], strides = [1, 1]} : vector<256x8xf32> to vector<64x8xf32>
    %72 = vector.shape_cast %71 : vector<64x8xf32> to vector<8x8x8xf32>
    %c1_i32 = arith.constant 1 : i32
    %73 = arith.addi %c1_i32, %56 : i32
    %c0_68 = arith.constant 0 : index
    %c1_69 = arith.constant 1 : index
    %74 = arith.index_cast %73 : i32 to index
    %c0_70 = arith.constant 0 : index
    %c0_71 = arith.constant 0 : index
    %75 = vector.load %arg11[%c0_68, %c1_69, %74, %c0_70, %c0_71] : memref<2x2x9x9x8xf32, #tpu.memory_space<vmem>>, vector<1x1x8x8x8xf32>
    %76 = vector.shape_cast %75 : vector<1x1x8x8x8xf32> to vector<8x8x8xf32>
    %77 = vector.shape_cast %72 : vector<8x8x8xf32> to vector<1x1x8x8x8xf32>
    tpu.vector_store %arg11[%c0_68, %c1_69, %74, %c0_70, %c0_71], %77 {strides = array<i32>} : memref<2x2x9x9x8xf32, #tpu.memory_space<vmem>>, vector<1x1x8x8x8xf32>,
    %78 = vector.extract_strided_slice %55 {offsets = [192, 0], sizes = [64, 8], strides = [1, 1]} : vector<256x8xf32> to vector<64x8xf32>
    %79 = vector.shape_cast %78 : vector<64x8xf32> to vector<8x8x8xf32>
    %c1_i32_72 = arith.constant 1 : i32
    %80 = arith.addi %c1_i32_72, %56 : i32
    %c0_73 = arith.constant 0 : index
    %c0_74 = arith.constant 0 : index
    %81 = arith.index_cast %80 : i32 to index
    %c1_75 = arith.constant 1 : index
    %c0_76 = arith.constant 0 : index
    %82 = vector.load %arg11[%c0_73, %c0_74, %81, %c1_75, %c0_76] : memref<2x2x9x9x8xf32, #tpu.memory_space<vmem>>, vector<1x1x8x8x8xf32>
    %83 = vector.shape_cast %82 : vector<1x1x8x8x8xf32> to vector<8x8x8xf32>
    %84 = vector.shape_cast %79 : vector<8x8x8xf32> to vector<1x1x8x8x8xf32>
    tpu.vector_store %arg11[%c0_73, %c0_74, %81, %c1_75, %c0_76], %84 {strides = array<i32>} : memref<2x2x9x9x8xf32, #tpu.memory_space<vmem>>, vector<1x1x8x8x8xf32>,
    %c1_i32_77 = arith.constant 1 : i32
    %c0_i32_78 = arith.constant 0 : i32
    %c8_i32_79 = arith.constant 8 : i32
    %85 = arith.muli %c0_i32_78, %c8_i32_79 : i32
    %cst_80 = arith.constant 0.000000e+00 : f32
    %86 = vector.broadcast %cst_80 : f32 to vector<8x8x8xf32>
    %c0_i32_81 = arith.constant 0 : i32
    %87 = arith.addi %85, %c0_i32_81 : i32
    %c0_82 = arith.constant 0 : index
    %c0_83 = arith.constant 0 : index
    %88 = arith.index_cast %87 : i32 to index
    %c0_84 = arith.constant 0 : index
    %c0_85 = arith.constant 0 : index
    %89 = vector.load %arg11[%c0_82, %c0_83, %88, %c0_84, %c0_85] : memref<2x2x9x9x8xf32, #tpu.memory_space<vmem>>, vector<1x1x8x9x8xf32>
    %90 = vector.shape_cast %89 : vector<1x1x8x9x8xf32> to vector<8x9x8xf32>
    %c0_86 = arith.constant 0 : index
    %c1_87 = arith.constant 1 : index
    %91 = arith.index_cast %87 : i32 to index
    %c0_88 = arith.constant 0 : index
    %c0_89 = arith.constant 0 : index
    %92 = vector.load %arg11[%c0_86, %c1_87, %91, %c0_88, %c0_89] : memref<2x2x9x9x8xf32, #tpu.memory_space<vmem>>, vector<1x1x8x9x8xf32>
    %93 = vector.shape_cast %92 : vector<1x1x8x9x8xf32> to vector<8x9x8xf32>
    %94 = vector.extract_strided_slice %90 {offsets = [0, 0, 0], sizes = [8, 8, 8], strides = [1, 1, 1]} : vector<8x9x8xf32> to vector<8x8x8xf32>
    %95 = vector.shape_cast %4 : vector<1x8xf32> to vector<1x1x8xf32>
    %96 = vector.broadcast %95 : vector<1x1x8xf32> to vector<8x8x8xf32>
    %97 = arith.mulf %94, %96 : vector<8x8x8xf32>
    %98 = arith.addf %86, %97 : vector<8x8x8xf32>
    %99 = vector.extract_strided_slice %93 {offsets = [0, 0, 0], sizes = [8, 8, 8], strides = [1, 1, 1]} : vector<8x9x8xf32> to vector<8x8x8xf32>
    %100 = vector.shape_cast %5 : vector<1x8xf32> to vector<1x1x8xf32>
    %101 = vector.broadcast %100 : vector<1x1x8xf32> to vector<8x8x8xf32>
    %102 = arith.mulf %99, %101 : vector<8x8x8xf32>
    %103 = arith.addf %98, %102 : vector<8x8x8xf32>
    %104 = vector.extract_strided_slice %90 {offsets = [0, 1, 0], sizes = [8, 8, 8], strides = [1, 1, 1]} : vector<8x9x8xf32> to vector<8x8x8xf32>
    %105 = vector.shape_cast %6 : vector<1x8xf32> to vector<1x1x8xf32>
    %106 = vector.broadcast %105 : vector<1x1x8xf32> to vector<8x8x8xf32>
    %107 = arith.mulf %104, %106 : vector<8x8x8xf32>
    %108 = arith.addf %103, %107 : vector<8x8x8xf32>
    %c0_i32_90 = arith.constant 0 : i32
    %109 = arith.addi %85, %c0_i32_90 : i32
    %c1_91 = arith.constant 1 : index
    %c0_92 = arith.constant 0 : index
    %110 = arith.index_cast %109 : i32 to index
    %c0_93 = arith.constant 0 : index
    %c0_94 = arith.constant 0 : index
    %111 = vector.load %arg11[%c1_91, %c0_92, %110, %c0_93, %c0_94] : memref<2x2x9x9x8xf32, #tpu.memory_space<vmem>>, vector<1x1x8x9x8xf32>
    %112 = vector.shape_cast %111 : vector<1x1x8x9x8xf32> to vector<8x9x8xf32>
    %c1_95 = arith.constant 1 : index
    %c1_96 = arith.constant 1 : index
    %113 = arith.index_cast %109 : i32 to index
    %c0_97 = arith.constant 0 : index
    %c0_98 = arith.constant 0 : index
    %114 = vector.load %arg11[%c1_95, %c1_96, %113, %c0_97, %c0_98] : memref<2x2x9x9x8xf32, #tpu.memory_space<vmem>>, vector<1x1x8x9x8xf32>
    %115 = vector.shape_cast %114 : vector<1x1x8x9x8xf32> to vector<8x9x8xf32>
    %116 = vector.extract_strided_slice %112 {offsets = [0, 0, 0], sizes = [8, 8, 8], strides = [1, 1, 1]} : vector<8x9x8xf32> to vector<8x8x8xf32>
    %117 = vector.shape_cast %7 : vector<1x8xf32> to vector<1x1x8xf32>
    %118 = vector.broadcast %117 : vector<1x1x8xf32> to vector<8x8x8xf32>
    %119 = arith.mulf %116, %118 : vector<8x8x8xf32>
    %120 = arith.addf %108, %119 : vector<8x8x8xf32>
    %121 = vector.extract_strided_slice %115 {offsets = [0, 0, 0], sizes = [8, 8, 8], strides = [1, 1, 1]} : vector<8x9x8xf32> to vector<8x8x8xf32>
    %122 = vector.shape_cast %8 : vector<1x8xf32> to vector<1x1x8xf32>
    %123 = vector.broadcast %122 : vector<1x1x8xf32> to vector<8x8x8xf32>
    %124 = arith.mulf %121, %123 : vector<8x8x8xf32>
    %125 = arith.addf %120, %124 : vector<8x8x8xf32>
    %126 = vector.extract_strided_slice %112 {offsets = [0, 1, 0], sizes = [8, 8, 8], strides = [1, 1, 1]} : vector<8x9x8xf32> to vector<8x8x8xf32>
    %127 = vector.shape_cast %9 : vector<1x8xf32> to vector<1x1x8xf32>
    %128 = vector.broadcast %127 : vector<1x1x8xf32> to vector<8x8x8xf32>
    %129 = arith.mulf %126, %128 : vector<8x8x8xf32>
    %130 = arith.addf %125, %129 : vector<8x8x8xf32>
    %c1_i32_99 = arith.constant 1 : i32
    %131 = arith.addi %85, %c1_i32_99 : i32
    %c0_100 = arith.constant 0 : index
    %c0_101 = arith.constant 0 : index
    %132 = arith.index_cast %131 : i32 to index
    %c0_102 = arith.constant 0 : index
    %c0_103 = arith.constant 0 : index
    %133 = vector.load %arg11[%c0_100, %c0_101, %132, %c0_102, %c0_103] : memref<2x2x9x9x8xf32, #tpu.memory_space<vmem>>, vector<1x1x8x9x8xf32>
    %134 = vector.shape_cast %133 : vector<1x1x8x9x8xf32> to vector<8x9x8xf32>
    %c0_104 = arith.constant 0 : index
    %c1_105 = arith.constant 1 : index
    %135 = arith.index_cast %131 : i32 to index
    %c0_106 = arith.constant 0 : index
    %c0_107 = arith.constant 0 : index
    %136 = vector.load %arg11[%c0_104, %c1_105, %135, %c0_106, %c0_107] : memref<2x2x9x9x8xf32, #tpu.memory_space<vmem>>, vector<1x1x8x9x8xf32>
    %137 = vector.shape_cast %136 : vector<1x1x8x9x8xf32> to vector<8x9x8xf32>
    %138 = vector.extract_strided_slice %134 {offsets = [0, 0, 0], sizes = [8, 8, 8], strides = [1, 1, 1]} : vector<8x9x8xf32> to vector<8x8x8xf32>
    %139 = vector.shape_cast %10 : vector<1x8xf32> to vector<1x1x8xf32>
    %140 = vector.broadcast %139 : vector<1x1x8xf32> to vector<8x8x8xf32>
    %141 = arith.mulf %138, %140 : vector<8x8x8xf32>
    %142 = arith.addf %130, %141 : vector<8x8x8xf32>
    %143 = vector.extract_strided_slice %137 {offsets = [0, 0, 0], sizes = [8, 8, 8], strides = [1, 1, 1]} : vector<8x9x8xf32> to vector<8x8x8xf32>
    %144 = vector.shape_cast %11 : vector<1x8xf32> to vector<1x1x8xf32>
    %145 = vector.broadcast %144 : vector<1x1x8xf32> to vector<8x8x8xf32>
    %146 = arith.mulf %143, %145 : vector<8x8x8xf32>
    %147 = arith.addf %142, %146 : vector<8x8x8xf32>
    %148 = vector.extract_strided_slice %134 {offsets = [0, 1, 0], sizes = [8, 8, 8], strides = [1, 1, 1]} : vector<8x9x8xf32> to vector<8x8x8xf32>
    %149 = vector.shape_cast %12 : vector<1x8xf32> to vector<1x1x8xf32>
    %150 = vector.broadcast %149 : vector<1x1x8xf32> to vector<8x8x8xf32>
    %151 = arith.mulf %148, %150 : vector<8x8x8xf32>
    %152 = arith.addf %147, %151 : vector<8x8x8xf32>
    %153 = vector.shape_cast %13 : vector<1x8xf32> to vector<1x1x8xf32>
    %154 = vector.broadcast %153 : vector<1x1x8xf32> to vector<8x8x8xf32>
    %155 = arith.addf %152, %154 : vector<8x8x8xf32>
    %cst_108 = arith.constant 0.000000e+00 : f32
    %156 = vector.broadcast %cst_108 : f32 to vector<8x8x8xf32>
    %157 = arith.cmpf oge, %155, %156 : vector<8x8x8xf32>
    %158 = vector.shape_cast %14 : vector<1x8xf32> to vector<1x1x8xf32>
    %159 = vector.broadcast %158 : vector<1x1x8xf32> to vector<8x8x8xf32>
    %160 = arith.mulf %155, %159 : vector<8x8x8xf32>
    %161 = arith.select %157, %155, %160 : vector<8x8x8xi1>, vector<8x8x8xf32>
    %162 = vector.shape_cast %161 : vector<8x8x8xf32> to vector<64x8xf32>
    %cst_109 = arith.constant dense<0.000000e+00> : vector<64x16xf32>
    %163 = tpu.matmul %162, %15, %cst_109 {dimension_numbers = #tpu.dot_dimension_numbers<[1], [0], [0], [1], [0, 0, 1, 1], [], []>} : vector<64x8xf32>, vector<8x16xf32>, vector<64x16xf32> -> vector<64x16xf32>
    %164 = vector.broadcast %16 : vector<1x16xf32> to vector<64x16xf32>
    %165 = arith.addf %163, %164 : vector<64x16xf32>
    %c8_i32_110 = arith.constant 8 : i32
    %166 = arith.muli %85, %c8_i32_110 : i32
    %167 = tpu.assume_multiple %166, 64 : i32
    %c0_111 = arith.constant 0 : index
    %168 = arith.index_cast %167 : i32 to index
    %c0_112 = arith.constant 0 : index
    %169 = vector.load %arg10[%c0_111, %168, %c0_112] : memref<1x64x16xf32, #tpu.memory_space<vmem>>, vector<1x64x16xf32>
    %170 = vector.shape_cast %169 : vector<1x64x16xf32> to vector<64x16xf32>
    %171 = vector.shape_cast %165 : vector<64x16xf32> to vector<1x64x16xf32>
    tpu.vector_store %arg10[%c0_111, %168, %c0_112], %171 {strides = array<i32>} : memref<1x64x16xf32, #tpu.memory_space<vmem>>, vector<1x64x16xf32>,
    %c1_i32_113 = arith.constant 1 : i32
    return
  }
  func.func @transform_0(%arg0: i32) -> (i32, i32, i32) {
    %c0_i32 = arith.constant 0 : i32
    %c0_i32_0 = arith.constant 0 : i32
    %c0_i32_1 = arith.constant 0 : i32
    return %arg0, %c0_i32, %c0_i32_0 : i32, i32, i32
  }
  func.func @transform_1(%arg0: i32) -> (i32, i32) {
    %c0_i32 = arith.constant 0 : i32
    %c0_i32_0 = arith.constant 0 : i32
    %c0_i32_1 = arith.constant 0 : i32
    return %c0_i32, %c0_i32_0 : i32, i32
  }
  func.func @transform_2(%arg0: i32) -> (i32, i32) {
    %c0_i32 = arith.constant 0 : i32
    %c0_i32_0 = arith.constant 0 : i32
    %c0_i32_1 = arith.constant 0 : i32
    return %c0_i32, %c0_i32_0 : i32, i32
  }
  func.func @transform_3(%arg0: i32) -> (i32, i32) {
    %c0_i32 = arith.constant 0 : i32
    %c0_i32_0 = arith.constant 0 : i32
    %c0_i32_1 = arith.constant 0 : i32
    return %c0_i32, %c0_i32_0 : i32, i32
  }
  func.func @transform_4(%arg0: i32) -> (i32, i32) {
    %c0_i32 = arith.constant 0 : i32
    %c0_i32_0 = arith.constant 0 : i32
    %c0_i32_1 = arith.constant 0 : i32
    return %c0_i32, %c0_i32_0 : i32, i32
  }
  func.func @transform_5(%arg0: i32) -> (i32, i32) {
    %c0_i32 = arith.constant 0 : i32
    %c0_i32_0 = arith.constant 0 : i32
    %c0_i32_1 = arith.constant 0 : i32
    return %c0_i32, %c0_i32_0 : i32, i32
  }
  func.func @transform_6(%arg0: i32) -> (i32, i32) {
    %c0_i32 = arith.constant 0 : i32
    %c0_i32_0 = arith.constant 0 : i32
    %c0_i32_1 = arith.constant 0 : i32
    return %c0_i32, %c0_i32_0 : i32, i32
  }
  func.func @transform_7(%arg0: i32) -> (i32, i32) {
    %c0_i32 = arith.constant 0 : i32
    %c0_i32_0 = arith.constant 0 : i32
    %c0_i32_1 = arith.constant 0 : i32
    return %c0_i32, %c0_i32_0 : i32, i32
  }
  func.func @transform_8(%arg0: i32) -> (i32, i32) {
    %c0_i32 = arith.constant 0 : i32
    %c0_i32_0 = arith.constant 0 : i32
    %c0_i32_1 = arith.constant 0 : i32
    return %c0_i32, %c0_i32_0 : i32, i32
  }
  func.func @transform_9(%arg0: i32) -> (i32, i32, i32) {
    %c0_i32 = arith.constant 0 : i32
    %c0_i32_0 = arith.constant 0 : i32
    %c0_i32_1 = arith.constant 0 : i32
    return %arg0, %c0_i32, %c0_i32_0 : i32, i32, i32
  }
}

</mosaic_0001>

<llo_original>
// kernel: depth_wise_forward.1
$region0: #{depth_wise_forward.1}
  #allocation0 [shape = 'u32[]', space=smem, size = 0x4, offset = 0x4, fixed_abs, tag = 'smem constant byte address 0x4 - core index']
  #allocation1 [shape = 'u32[144,128]{1,0:T(1,128)}', space=vmem, size = 0x12000, scoped, tag = 'internal scratch']
  #allocation2 [shape = 'f32[2,2,9,9,8]{4,3,2,1,0:T(8,128)}', space=vmem, size = 0x48000, scoped, tag = 'scratch operand']
  %s0 = inlined_call_operand.vmem [shape: f32[8,64,4], index: 0, kind: input, shape index: {}]
  %s1 = inlined_call_operand.vmem [shape: f32[4,8], index: 1, kind: input, shape index: {}]
  %s2 = inlined_call_operand.vmem [shape: f32[1,8], index: 2, kind: input, shape index: {}]
  %s3 = inlined_call_operand.vmem [shape: f32[1,8], index: 3, kind: input, shape index: {}]
  %s4 = inlined_call_operand.vmem [shape: f32[9,8], index: 4, kind: input, shape index: {}]
  %s5 = inlined_call_operand.vmem [shape: f32[1,8], index: 5, kind: input, shape index: {}]
  %s6 = inlined_call_operand.vmem [shape: f32[1,8], index: 6, kind: input, shape index: {}]
  %s7 = inlined_call_operand.vmem [shape: f32[8,16], index: 7, kind: input, shape index: {}]
  %s8 = inlined_call_operand.vmem [shape: f32[1,16], index: 8, kind: input, shape index: {}]
  %s9 = inlined_call_operand.hbm [shape: f32[2,64,16], index: 9, kind: output, shape index: {}]
  %s10 = sld [smem:[#allocation0]]
  $region69: #{depth_wise_forward.1} parent=0
    _
  %s12 = ssub.s32 1, %s10
  %s13 = scalar_select 0, %s12, %s10
  $region1: #{depth_wise_forward.1} parent=0
    #allocation3 [shape = 'u8[65536]{0}', space=vmem, size = 0x10000, scoped, tag = 'output window, operand 0']
    #allocation4 [shape = 's32[2]{0}', space=sflag, size = 0x8, scoped, tag = 'scoped memory for depth_wise_forward.1']
    %14 = vsyncpa [#allocation4], 0
    %s15 = scalar_lea.sflag [#allocation4], 1
    %16 = vsyncpa %s15, 0
    loop: start=0, step=1, limit=4
    $region2: #{depth_wise_forward.1} parent=1 // loop_pre_header
      _
    $region3: #{depth_wise_forward.1} parent=1 // loop_header
      %s18 = sphi 0, %s22
      %p19 = scmp.ge.s32.totalorder %s18, 4
      %s28 = sphi 0, %s30
      %s31 = sphi 0, %s28
      %s32 = sphi 0, %s31
      %s48 = sphi 0, %s32
      %s52 = sphi 0, %s52
      %s54 = sphi 0, %s52
      %s55 = sphi 0, %s54
      %s69 = sphi 0, %s55
      %s73 = sphi 0, %s73
      %s75 = sphi 0, %s73
      %s76 = sphi 0, %s75
      %s90 = sphi 0, %s76
      %s94 = sphi 0, %s94
      %s96 = sphi 0, %s94
      %s97 = sphi 0, %s96
      %s111 = sphi 0, %s97
      %s115 = sphi 0, %s115
      %s117 = sphi 0, %s115
      %s118 = sphi 0, %s117
      %s132 = sphi 0, %s118
      %s136 = sphi 0, %s136
      %s138 = sphi 0, %s136
      %s139 = sphi 0, %s138
      %s153 = sphi 0, %s139
      %s157 = sphi 0, %s157
      %s159 = sphi 0, %s157
      %s160 = sphi 0, %s159
      %s174 = sphi 0, %s160
      %s178 = sphi 0, %s178
      %s180 = sphi 0, %s178
      %s181 = sphi 0, %s180
      %s195 = sphi 0, %s181
      %s199 = sphi 0, %s199
      %s201 = sphi 0, %s199
      %s202 = sphi 0, %s201
      %s216 = sphi 0, %s202
      %s222 = sphi 0, %s224
      %s225 = sphi 0, %s222
      %s226 = sphi 0, %s225
      %s242 = sphi 0, %s226
    $region4: #{depth_wise_forward.1} parent=1 // loop_header_branch
      %21 = sbr.rel (%p19) target = $region8
    $region5: #{depth_wise_forward.1} parent=1 // loop_body
      %s23 = ssub.s32 %s18, 1
      %s24 = ssub.s32 %s18, 2
      %s25 = sadd.s32 %s18, 1
      %s26 = ssub.s32 %s18, %s25
      %p27 = scmp.eq.s32.totalorder %s26, 0
      %s29 = sadd.s32 %s28, 1
      %s30 = scalar_select %p27, %s28, %s29
      %p33 = pneg %p27
      %p34 = scmp.eq.s32.totalorder %s18, 1
      %p35 = por %p33, %p34
      %p36 = scmp.ne.s32.totalorder %s28, %s31
      %p37 = scmp.eq.s32.totalorder %s18, 0
      %p38 = por %p36, %p37
      %p39 = scmp.ne.s32.totalorder %s28, %s31
      %p40 = scmp.eq.s32.totalorder %s23, 1
      %p41 = por %p39, %p40
      %p42 = scmp.ne.s32.totalorder %s31, %s32
      %p43 = scmp.eq.s32.totalorder %s23, 0
      %p44 = por %p42, %p43
      %p45 = scmp.ne.s32.totalorder %s31, %s32
      %p46 = scmp.eq.s32.totalorder %s24, 1
      %p47 = por %p45, %p46
      %p49 = scmp.ne.s32.totalorder %s32, %s48
      %p50 = scmp.eq.s32.totalorder %s24, 0
      %p51 = por %p49, %p50
      %s53 = sadd.s32 %s52, 1
      %p56 = scmp.eq.s32.totalorder %s18, 1
      %p57 = scmp.ne.s32.totalorder %s52, %s54
      %p58 = scmp.eq.s32.totalorder %s18, 0
      %p59 = por %p57, %p58
      %p60 = scmp.ne.s32.totalorder %s52, %s54
      %p61 = scmp.eq.s32.totalorder %s23, 1
      %p62 = por %p60, %p61
      %p63 = scmp.ne.s32.totalorder %s54, %s55
      %p64 = scmp.eq.s32.totalorder %s23, 0
      %p65 = por %p63, %p64
      %p66 = scmp.ne.s32.totalorder %s54, %s55
      %p67 = scmp.eq.s32.totalorder %s24, 1
      %p68 = por %p66, %p67
      %p70 = scmp.ne.s32.totalorder %s55, %s69
      %p71 = scmp.eq.s32.totalorder %s24, 0
      %p72 = por %p70, %p71
      %s74 = sadd.s32 %s73, 1
      %p77 = scmp.eq.s32.totalorder %s18, 1
      %p78 = scmp.ne.s32.totalorder %s73, %s75
      %p79 = scmp.eq.s32.totalorder %s18, 0
      %p80 = por %p78, %p79
      %p81 = scmp.ne.s32.totalorder %s73, %s75
      %p82 = scmp.eq.s32.totalorder %s23, 1
      %p83 = por %p81, %p82
      %p84 = scmp.ne.s32.totalorder %s75, %s76
      %p85 = scmp.eq.s32.totalorder %s23, 0
      %p86 = por %p84, %p85
      %p87 = scmp.ne.s32.totalorder %s75, %s76
      %p88 = scmp.eq.s32.totalorder %s24, 1
      %p89 = por %p87, %p88
      %p91 = scmp.ne.s32.totalorder %s76, %s90
      %p92 = scmp.eq.s32.totalorder %s24, 0
      %p93 = por %p91, %p92
      %s95 = sadd.s32 %s94, 1
      %p98 = scmp.eq.s32.totalorder %s18, 1
      %p99 = scmp.ne.s32.totalorder %s94, %s96
      %p100 = scmp.eq.s32.totalorder %s18, 0
      %p101 = por %p99, %p100
      %p102 = scmp.ne.s32.totalorder %s94, %s96
      %p103 = scmp.eq.s32.totalorder %s23, 1
      %p104 = por %p102, %p103
      %p105 = scmp.ne.s32.totalorder %s96, %s97
      %p106 = scmp.eq.s32.totalorder %s23, 0
      %p107 = por %p105, %p106
      %p108 = scmp.ne.s32.totalorder %s96, %s97
      %p109 = scmp.eq.s32.totalorder %s24, 1
      %p110 = por %p108, %p109
      %p112 = scmp.ne.s32.totalorder %s97, %s111
      %p113 = scmp.eq.s32.totalorder %s24, 0
      %p114 = por %p112, %p113
      %s116 = sadd.s32 %s115, 1
      %p119 = scmp.eq.s32.totalorder %s18, 1
      %p120 = scmp.ne.s32.totalorder %s115, %s117
      %p121 = scmp.eq.s32.totalorder %s18, 0
      %p122 = por %p120, %p121
      %p123 = scmp.ne.s32.totalorder %s115, %s117
      %p124 = scmp.eq.s32.totalorder %s23, 1
      %p125 = por %p123, %p124
      %p126 = scmp.ne.s32.totalorder %s117, %s118
      %p127 = scmp.eq.s32.totalorder %s23, 0
      %p128 = por %p126, %p127
      %p129 = scmp.ne.s32.totalorder %s117, %s118
      %p130 = scmp.eq.s32.totalorder %s24, 1
      %p131 = por %p129, %p130
      %p133 = scmp.ne.s32.totalorder %s118, %s132
      %p134 = scmp.eq.s32.totalorder %s24, 0
      %p135 = por %p133, %p134
      %s137 = sadd.s32 %s136, 1
      %p140 = scmp.eq.s32.totalorder %s18, 1
      %p141 = scmp.ne.s32.totalorder %s136, %s138
      %p142 = scmp.eq.s32.totalorder %s18, 0
      %p143 = por %p141, %p142
      %p144 = scmp.ne.s32.totalorder %s136, %s138
      %p145 = scmp.eq.s32.totalorder %s23, 1
      %p146 = por %p144, %p145
      %p147 = scmp.ne.s32.totalorder %s138, %s139
      %p148 = scmp.eq.s32.totalorder %s23, 0
      %p149 = por %p147, %p148
      %p150 = scmp.ne.s32.totalorder %s138, %s139
      %p151 = scmp.eq.s32.totalorder %s24, 1
      %p152 = por %p150, %p151
      %p154 = scmp.ne.s32.totalorder %s139, %s153
      %p155 = scmp.eq.s32.totalorder %s24, 0
      %p156 = por %p154, %p155
      %s158 = sadd.s32 %s157, 1
      %p161 = scmp.eq.s32.totalorder %s18, 1
      %p162 = scmp.ne.s32.totalorder %s157, %s159
      %p163 = scmp.eq.s32.totalorder %s18, 0
      %p164 = por %p162, %p163
      %p165 = scmp.ne.s32.totalorder %s157, %s159
      %p166 = scmp.eq.s32.totalorder %s23, 1
      %p167 = por %p165, %p166
      %p168 = scmp.ne.s32.totalorder %s159, %s160
      %p169 = scmp.eq.s32.totalorder %s23, 0
      %p170 = por %p168, %p169
      %p171 = scmp.ne.s32.totalorder %s159, %s160
      %p172 = scmp.eq.s32.totalorder %s24, 1
      %p173 = por %p171, %p172
      %p175 = scmp.ne.s32.totalorder %s160, %s174
      %p176 = scmp.eq.s32.totalorder %s24, 0
      %p177 = por %p175, %p176
      %s179 = sadd.s32 %s178, 1
      %p182 = scmp.eq.s32.totalorder %s18, 1
      %p183 = scmp.ne.s32.totalorder %s178, %s180
      %p184 = scmp.eq.s32.totalorder %s18, 0
      %p185 = por %p183, %p184
      %p186 = scmp.ne.s32.totalorder %s178, %s180
      %p187 = scmp.eq.s32.totalorder %s23, 1
      %p188 = por %p186, %p187
      %p189 = scmp.ne.s32.totalorder %s180, %s181
      %p190 = scmp.eq.s32.totalorder %s23, 0
      %p191 = por %p189, %p190
      %p192 = scmp.ne.s32.totalorder %s180, %s181
      %p193 = scmp.eq.s32.totalorder %s24, 1
      %p194 = por %p192, %p193
      %p196 = scmp.ne.s32.totalorder %s181, %s195
      %p197 = scmp.eq.s32.totalorder %s24, 0
      %p198 = por %p196, %p197
      %s200 = sadd.s32 %s199, 1
      %p203 = scmp.eq.s32.totalorder %s18, 1
      %p204 = scmp.ne.s32.totalorder %s199, %s201
      %p205 = scmp.eq.s32.totalorder %s18, 0
      %p206 = por %p204, %p205
      %p207 = scmp.ne.s32.totalorder %s199, %s201
      %p208 = scmp.eq.s32.totalorder %s23, 1
      %p209 = por %p207, %p208
      %p210 = scmp.ne.s32.totalorder %s201, %s202
      %p211 = scmp.eq.s32.totalorder %s23, 0
      %p212 = por %p210, %p211
      %p213 = scmp.ne.s32.totalorder %s201, %s202
      %p214 = scmp.eq.s32.totalorder %s24, 1
      %p215 = por %p213, %p214
      %p217 = scmp.ne.s32.totalorder %s202, %s216
      %p218 = scmp.eq.s32.totalorder %s24, 0
      %p219 = por %p217, %p218
      %s220 = ssub.s32 %s18, %s25
      %p221 = scmp.eq.s32.totalorder %s220, 0
      %s223 = sadd.s32 %s222, 1
      %s224 = scalar_select %p221, %s222, %s223
      %p227 = pneg %p221
      %p228 = scmp.eq.s32.totalorder %s18, 1
      %p229 = por %p227, %p228
      %p230 = scmp.ne.s32.totalorder %s222, %s225
      %p231 = scmp.eq.s32.totalorder %s18, 0
      %p232 = por %p230, %p231
      %p233 = scmp.ne.s32.totalorder %s222, %s225
      %p234 = scmp.eq.s32.totalorder %s23, 1
      %p235 = por %p233, %p234
      %p236 = scmp.ne.s32.totalorder %s225, %s226
      %p237 = scmp.eq.s32.totalorder %s23, 0
      %p238 = por %p236, %p237
      %p239 = scmp.ne.s32.totalorder %s225, %s226
      %p240 = scmp.eq.s32.totalorder %s24, 1
      %p241 = por %p239, %p240
      %p243 = scmp.ne.s32.totalorder %s226, %s242
      %p244 = scmp.eq.s32.totalorder %s24, 0
      %p245 = por %p243, %p244
      %p246 = scmp.le.s32.totalorder 1, %s18
      %p247 = scmp.lt.s32.totalorder %s18, 3
      %p248 = pnand %p246, %p247
      %p249 = pneg %p248
      // Predicated region
      $region9: #{depth_wise_forward.1} parent=5 // pred_check
        _
      $region10: #{depth_wise_forward.1} parent=5 // pred_check_branch
        %251 = sbr.rel (%p248) target = $region12
      $region11: #{depth_wise_forward.1} parent=5 // pred_region
        %s252 = ssub.s32 %s18, 1
        // Predicated region
        $region13: #{depth_wise_forward.1} parent=11 // pred_check
          %p253 = pneg %p65
        $region14: #{depth_wise_forward.1} parent=11 // pred_check_branch
          %255 = sbr.rel (%p253) target = $region16
        $region15: #{depth_wise_forward.1} parent=11 // pred_region
          _
        $region16: #{depth_wise_forward.1} parent=11 // pred_fallthru
          _
        // Predicated region
        $region17: #{depth_wise_forward.1} parent=11 // pred_check
          %p256 = pneg %p86
        $region18: #{depth_wise_forward.1} parent=11 // pred_check_branch
          %258 = sbr.rel (%p256) target = $region20
        $region19: #{depth_wise_forward.1} parent=11 // pred_region
          _
        $region20: #{depth_wise_forward.1} parent=11 // pred_fallthru
          _
        // Predicated region
        $region21: #{depth_wise_forward.1} parent=11 // pred_check
          %p259 = pneg %p107
        $region22: #{depth_wise_forward.1} parent=11 // pred_check_branch
          %261 = sbr.rel (%p259) target = $region24
        $region23: #{depth_wise_forward.1} parent=11 // pred_region
          _
        $region24: #{depth_wise_forward.1} parent=11 // pred_fallthru
          _
        // Predicated region
        $region25: #{depth_wise_forward.1} parent=11 // pred_check
          %p262 = pneg %p128
        $region26: #{depth_wise_forward.1} parent=11 // pred_check_branch
          %264 = sbr.rel (%p262) target = $region28
        $region27: #{depth_wise_forward.1} parent=11 // pred_region
          _
        $region28: #{depth_wise_forward.1} parent=11 // pred_fallthru
          _
        // Predicated region
        $region29: #{depth_wise_forward.1} parent=11 // pred_check
          %p265 = pneg %p149
        $region30: #{depth_wise_forward.1} parent=11 // pred_check_branch
          %267 = sbr.rel (%p265) target = $region32
        $region31: #{depth_wise_forward.1} parent=11 // pred_region
          _
        $region32: #{depth_wise_forward.1} parent=11 // pred_fallthru
          _
        // Predicated region
        $region33: #{depth_wise_forward.1} parent=11 // pred_check
          %p268 = pneg %p170
        $region34: #{depth_wise_forward.1} parent=11 // pred_check_branch
          %270 = sbr.rel (%p268) target = $region36
        $region35: #{depth_wise_forward.1} parent=11 // pred_region
          _
        $region36: #{depth_wise_forward.1} parent=11 // pred_fallthru
          _
        // Predicated region
        $region37: #{depth_wise_forward.1} parent=11 // pred_check
          %p271 = pneg %p191
        $region38: #{depth_wise_forward.1} parent=11 // pred_check_branch
          %273 = sbr.rel (%p271) target = $region40
        $region39: #{depth_wise_forward.1} parent=11 // pred_region
          _
        $region40: #{depth_wise_forward.1} parent=11 // pred_fallthru
          _
        // Predicated region
        $region41: #{depth_wise_forward.1} parent=11 // pred_check
          %p274 = pneg %p212
        $region42: #{depth_wise_forward.1} parent=11 // pred_check_branch
          %276 = sbr.rel (%p274) target = $region44
        $region43: #{depth_wise_forward.1} parent=11 // pred_region
          _
        $region44: #{depth_wise_forward.1} parent=11 // pred_fallthru
          _
      $region12: #{depth_wise_forward.1} parent=5 // pred_fallthru
        _
      %p277 = scmp.lt.s32.totalorder %s18, 2
      // Predicated region
      $region45: #{depth_wise_forward.1} parent=5 // pred_check
        %p278 = pneg %p277
      $region46: #{depth_wise_forward.1} parent=5 // pred_check_branch
        %280 = sbr.rel (%p278) target = $region48
      $region47: #{depth_wise_forward.1} parent=5 // pred_region
        // Predicated region
        $region49: #{depth_wise_forward.1} parent=47 // pred_check
          %p281 = pneg %p38
        $region50: #{depth_wise_forward.1} parent=47 // pred_check_branch
          %283 = sbr.rel (%p281) target = $region52
        $region51: #{depth_wise_forward.1} parent=47 // pred_region
          %s284 = smul.u32 4, %s18
          %p285 = scmp.lt.s32.totalorder %s284, 7
          %s286 = scalar_select %p285, %s284, 7
          %s287 = smul.addr %s286, 8
          %s288 = smul.addr %s287, 8
          %s289 = scalar_lea.vmem %s0, %s288
          %s290 = smul.u32 4, %s18
        $region52: #{depth_wise_forward.1} parent=47 // pred_fallthru
          _
      $region48: #{depth_wise_forward.1} parent=5 // pred_fallthru
        _
      %p291 = scmp.le.s32.totalorder 1, %s18
      %p292 = scmp.lt.s32.totalorder %s18, 3
      %p293 = pnand %p291, %p292
      %p294 = pneg %p293
      // Predicated region
      $region53: #{depth_wise_forward.1} parent=5 // pred_check
        _
      $region54: #{depth_wise_forward.1} parent=5 // pred_check_branch
        %296 = sbr.rel (%p293) target = $region56
      $region55: #{depth_wise_forward.1} parent=5 // pred_region
        %s297 = ssub.s32 %s18, 1
        %s298 = smul.u32 4, %s23
        %p299 = scmp.lt.s32.totalorder %s298, 7
        %s300 = scalar_select %p299, %s298, 7
        %s301 = smul.addr %s300, 8
        %s302 = smul.addr %s301, 8
        %s303 = scalar_lea.vmem %s0, %s302
        %p304 = pneg %p44
        %p305 = pneg %p41
        %p306 = pneg %p65
        %p307 = pneg %p62
        %p308 = pneg %p86
        %p309 = pneg %p83
        %p310 = pneg %p107
        %p311 = pneg %p104
        %p312 = pneg %p128
        %p313 = pneg %p125
        %p314 = pneg %p149
        %p315 = pneg %p146
        %p316 = pneg %p170
        %p317 = pneg %p167
        %p318 = pneg %p191
        %p319 = pneg %p188
        %p320 = pneg %p212
        %p321 = pneg %p209
        %p322 = pneg %p238
        %p323 = pneg %p235
        %s324 = sand.u32 %s225, 1
        %s325 = scalar_lea.sflag [#allocation4], %s324
        %s326 = sand.u32 %s225, 1
        %s327 = smul.addr %s326, 64
        %s328 = scalar_lea.vmem [#allocation3], %s327
        %s329 = smul.u32 4, %s23
        %p330 = scmp.lt.s32.totalorder %s329, 7
        %s331 = scalar_select %p330, %s329, 7
        %s332 = smul.addr %s331, 8
        %s333 = smul.addr %s332, 8
        %s334 = scalar_lea.vmem %s0, %s333
        %s335 = smul.u32 4, %s23
        %v336 = vld [vmem:[%s1] sm:$0xf]
        %v337 = vld [vmem:[%s2] sm:$0x1]
        %v338 = vld [vmem:[%s3] sm:$0x1]
        %v339 = vld [vmem:[%s4] sm:$0xff]
        %v340 = vld [vmem:[%s4 + $0x8] sm:$0x1]
        %v341 = vld [vmem:[%s5] sm:$0x1]
        %v342 = vld [vmem:[%s6] sm:$0x1]
        %v343 = vld [vmem:[%s7] sm:$0xff]
        %v344 = vld [vmem:[%s8] sm:$0x1]
        %vm345 = vcmask 64512
        %346 = vst.msk [vmem:[#allocation2] sm:$0xff] %vm345, 0.0
        %vm347 = vcmask 57344
        %348 = vst.msk [vmem:[#allocation2 + $0x8] sm:$0x1] %vm347, 0.0
        %s349 = scalar_lea.vmem [#allocation2], 416
        %350 = vst.msk [vmem:[%s349] sm:$0xff] %vm345, 0.0
        %351 = vst.msk [vmem:[%s349 + $0x8] sm:$0x1] %vm347, 0.0
        %s352 = scalar_lea.vmem [#allocation2], 144
        %353 = vst.msk [vmem:[%s352] sm:$0xff] %vm345, 0.0
        %354 = vst.msk [vmem:[%s352 + $0x8] sm:$0x1] %vm347, 0.0
        %s355 = scalar_lea.vmem [#allocation2], 560
        %356 = vst.msk [vmem:[%s355] sm:$0xff] %vm345, 0.0
        %357 = vst.msk [vmem:[%s355 + $0x8] sm:$0x1] %vm347, 0.0
        %358 = vst.msk [vmem:[#allocation2] sm:$0x1] %vm347, 0.0
        %359 = vst.msk [vmem:[#allocation2 + $0x10] sm:$0x1] %vm347, 0.0
        %360 = vst.msk [vmem:[#allocation2 + $0x20] sm:$0x1] %vm347, 0.0
        %361 = vst.msk [vmem:[#allocation2 + $0x30] sm:$0x1] %vm347, 0.0
        %362 = vst.msk [vmem:[#allocation2 + $0x40] sm:$0x1] %vm347, 0.0
        %363 = vst.msk [vmem:[#allocation2 + $0x50] sm:$0x1] %vm347, 0.0
        %364 = vst.msk [vmem:[#allocation2 + $0x60] sm:$0x1] %vm347, 0.0
        %365 = vst.msk [vmem:[#allocation2 + $0x70] sm:$0x1] %vm347, 0.0
        %366 = vst.msk [vmem:[#allocation2 + $0x80] sm:$0x1] %vm347, 0.0
        %367 = vst.msk [vmem:[%s352 + $0x8] sm:$0x1] %vm347, 0.0
        %368 = vst.msk [vmem:[%s352 + $0x18] sm:$0x1] %vm347, 0.0
        %369 = vst.msk [vmem:[%s352 + $0x28] sm:$0x1] %vm347, 0.0
        %370 = vst.msk [vmem:[%s352 + $0x38] sm:$0x1] %vm347, 0.0
        %371 = vst.msk [vmem:[%s352 + $0x48] sm:$0x1] %vm347, 0.0
        %372 = vst.msk [vmem:[%s352 + $0x58] sm:$0x1] %vm347, 0.0
        %373 = vst.msk [vmem:[%s352 + $0x68] sm:$0x1] %vm347, 0.0
        %374 = vst.msk [vmem:[%s352 + $0x78] sm:$0x1] %vm347, 0.0
        %375 = vst.msk [vmem:[%s352 + $0x88] sm:$0x1] %vm347, 0.0
        %s376 = scalar_lea.vmem [#allocation2], 288
        %377 = vst.msk [vmem:[%s376] sm:$0x1] %vm347, 0.0
        %378 = vst.msk [vmem:[%s376 + $0x10] sm:$0x1] %vm347, 0.0
        %379 = vst.msk [vmem:[%s376 + $0x20] sm:$0x1] %vm347, 0.0
        %380 = vst.msk [vmem:[%s376 + $0x30] sm:$0x1] %vm347, 0.0
        %381 = vst.msk [vmem:[%s376 + $0x40] sm:$0x1] %vm347, 0.0
        %382 = vst.msk [vmem:[%s376 + $0x50] sm:$0x1] %vm347, 0.0
        %383 = vst.msk [vmem:[%s376 + $0x60] sm:$0x1] %vm347, 0.0
        %384 = vst.msk [vmem:[%s376 + $0x70] sm:$0x1] %vm347, 0.0
        %385 = vst.msk [vmem:[%s376 + $0x80] sm:$0x1] %vm347, 0.0
        %s386 = scalar_lea.vmem [#allocation2], 432
        %387 = vst.msk [vmem:[%s386 + $0x8] sm:$0x1] %vm347, 0.0
        %388 = vst.msk [vmem:[%s386 + $0x18] sm:$0x1] %vm347, 0.0
        %389 = vst.msk [vmem:[%s386 + $0x28] sm:$0x1] %vm347, 0.0
        %390 = vst.msk [vmem:[%s386 + $0x38] sm:$0x1] %vm347, 0.0
        %391 = vst.msk [vmem:[%s386 + $0x48] sm:$0x1] %vm347, 0.0
        %392 = vst.msk [vmem:[%s386 + $0x58] sm:$0x1] %vm347, 0.0
        %393 = vst.msk [vmem:[%s386 + $0x68] sm:$0x1] %vm347, 0.0
        %394 = vst.msk [vmem:[%s386 + $0x78] sm:$0x1] %vm347, 0.0
        %395 = vst.msk [vmem:[%s386 + $0x88] sm:$0x1] %vm347, 0.0
        %v396 = vld [vmem:[%s334] sm:$0xff]
        %v397 = vld [vmem:[%s334 + $0x8] sm:$0xff]
        %v398 = vld [vmem:[%s334 + $0x10] sm:$0xff]
        %v399 = vld [vmem:[%s334 + $0x18] sm:$0xff]
        %v400 = vld [vmem:[%s334 + $0x20] sm:$0xff]
        %v401 = vld [vmem:[%s334 + $0x28] sm:$0xff]
        %v402 = vld [vmem:[%s334 + $0x30] sm:$0xff]
        %v403 = vld [vmem:[%s334 + $0x38] sm:$0xff]
        %v404 = vld [vmem:[%s334 + $0x40] sm:$0xff]
        %v405 = vld [vmem:[%s334 + $0x48] sm:$0xff]
        %v406 = vld [vmem:[%s334 + $0x50] sm:$0xff]
        %v407 = vld [vmem:[%s334 + $0x58] sm:$0xff]
        %v408 = vld [vmem:[%s334 + $0x60] sm:$0xff]
        %v409 = vld [vmem:[%s334 + $0x68] sm:$0xff]
        %v410 = vld [vmem:[%s334 + $0x70] sm:$0xff]
        %v411 = vld [vmem:[%s334 + $0x78] sm:$0xff]
        %v412 = vld [vmem:[%s334 + $0x80] sm:$0xff]
        %v413 = vld [vmem:[%s334 + $0x88] sm:$0xff]
        %v414 = vld [vmem:[%s334 + $0x90] sm:$0xff]
        %v415 = vld [vmem:[%s334 + $0x98] sm:$0xff]
        %v416 = vld [vmem:[%s334 + $0xa0] sm:$0xff]
        %v417 = vld [vmem:[%s334 + $0xa8] sm:$0xff]
        %v418 = vld [vmem:[%s334 + $0xb0] sm:$0xff]
        %v419 = vld [vmem:[%s334 + $0xb8] sm:$0xff]
        %v420 = vld [vmem:[%s334 + $0xc0] sm:$0xff]
        %v421 = vld [vmem:[%s334 + $0xc8] sm:$0xff]
        %v422 = vld [vmem:[%s334 + $0xd0] sm:$0xff]
        %v423 = vld [vmem:[%s334 + $0xd8] sm:$0xff]
        %v424 = vld [vmem:[%s334 + $0xe0] sm:$0xff]
        %v425 = vld [vmem:[%s334 + $0xe8] sm:$0xff]
        %v426 = vld [vmem:[%s334 + $0xf0] sm:$0xff]
        %v427 = vld [vmem:[%s334 + $0xf8] sm:$0xff]
        %v429 = vlaneseq
        %v430 = vshrl.u32 %v429, 7
        %v431 = vsub.s32 0, %v430
        %v432 = vrot.slane %v337, %v431
        %vm434 = vcmask 31744
        %v436 = vsel %vm434, %v396, 0
        %v439 = vsel %vm434, %v397, 0
        %v442 = vsel %vm434, %v398, 0
        %v445 = vsel %vm434, %v399, 0
        %v448 = vsel %vm434, %v400, 0
        %v451 = vsel %vm434, %v401, 0
        %v454 = vsel %vm434, %v402, 0
        %v457 = vsel %vm434, %v403, 0
        %v460 = vsel %vm434, %v404, 0
        %v463 = vsel %vm434, %v405, 0
        %v466 = vsel %vm434, %v406, 0
        %v469 = vsel %vm434, %v407, 0
        %v472 = vsel %vm434, %v408, 0
        %v475 = vsel %vm434, %v409, 0
        %v478 = vsel %vm434, %v410, 0
        %v481 = vsel %vm434, %v411, 0
        %v484 = vsel %vm434, %v412, 0
        %v487 = vsel %vm434, %v413, 0
        %v490 = vsel %vm434, %v414, 0
        %v493 = vsel %vm434, %v415, 0
        %v496 = vsel %vm434, %v416, 0
        %v499 = vsel %vm434, %v417, 0
        %v502 = vsel %vm434, %v418, 0
        %v505 = vsel %vm434, %v419, 0
        %v508 = vsel %vm434, %v420, 0
        %v511 = vsel %vm434, %v421, 0
        %v514 = vsel %vm434, %v422, 0
        %v517 = vsel %vm434, %v423, 0
        %v520 = vsel %vm434, %v424, 0
        %v523 = vsel %vm434, %v425, 0
        %v526 = vsel %vm434, %v426, 0
        %v529 = vsel %vm434, %v427, 0
        %vm531 = vcmask 1043456
        %v533 = vsel %vm531, %v336, 0
        %535 = vmatprep.subr.mxu0 0.0
        %536 = vmatpush1.msra.mxu0 %v533
        %537 = vmatprep.subr.mxu0 0.0
        %538 = vmatpush1.msra.mxu0 0.0
        %539 = vmatprep.subr.mxu0 0.0
        %540 = vmatpush1.msra.mxu0 0.0
        %541 = vmatprep.subr.mxu0 0.0
        %542 = vmatpush1.msra.mxu0 0.0
        %543 = vmatprep.subr.mxu0 0.0
        %544 = vmatpush1.msra.mxu0 0.0
        %545 = vmatprep.subr.mxu0 0.0
        %546 = vmatpush1.msra.mxu0 0.0
        %547 = vmatprep.subr.mxu0 0.0
        %548 = vmatpush1.msra.mxu0 0.0
        %549 = vmatprep.subr.mxu0 0.0
        %550 = vmatpush1.msra.mxu0 0.0
        %551 = vmatprep.subr.mxu0 0.0
        %552 = vmatpush1.msra.mxu0 0.0
        %553 = vmatprep.subr.mxu0 0.0
        %554 = vmatpush1.msra.mxu0 0.0
        %555 = vmatprep.subr.mxu0 0.0
        %556 = vmatpush1.msra.mxu0 0.0
        %557 = vmatprep.subr.mxu0 0.0
        %558 = vmatpush1.msra.mxu0 0.0
        %559 = vmatprep.subr.mxu0 0.0
        %560 = vmatpush1.msra.mxu0 0.0
        %561 = vmatprep.subr.mxu0 0.0
        %562 = vmatpush1.msra.mxu0 0.0
        %563 = vmatprep.subr.mxu0 0.0
        %564 = vmatpush1.msra.mxu0 0.0
        %565 = vmatprep.subr.mxu0 0.0
        %566 = vmatpush1.msra.mxu0 0.0
        %567 = vmatprep.subr.mxu0 0.0
        %568 = vmatpush1.msra.mxu0 0.0
        %569 = vmatprep.subr.mxu0 0.0
        %570 = vmatpush1.msra.mxu0 0.0
        %571 = vmatprep.subr.mxu0 0.0
        %572 = vmatpush1.msra.mxu0 0.0
        %573 = vmatprep.subr.mxu0 0.0
        %574 = vmatpush1.msra.mxu0 0.0
        %575 = vmatprep.subr.mxu0 0.0
        %576 = vmatpush1.msra.mxu0 0.0
        %577 = vmatprep.subr.mxu0 0.0
        %578 = vmatpush1.msra.mxu0 0.0
        %579 = vmatprep.subr.mxu0 0.0
        %580 = vmatpush1.msra.mxu0 0.0
        %581 = vmatprep.subr.mxu0 0.0
        %582 = vmatpush1.msra.mxu0 0.0
        %583 = vmatprep.subr.mxu0 0.0
        %584 = vmatpush1.msra.mxu0 0.0
        %585 = vmatprep.subr.mxu0 0.0
        %586 = vmatpush1.msra.mxu0 0.0
        %587 = vmatprep.subr.mxu0 0.0
        %588 = vmatpush1.msra.mxu0 0.0
        %589 = vmatprep.subr.mxu0 0.0
        %590 = vmatpush1.msra.mxu0 0.0
        %591 = vmatprep.subr.mxu0 0.0
        %592 = vmatpush1.msra.mxu0 0.0
        %593 = vmatprep.subr.mxu0 0.0
        %594 = vmatpush1.msra.mxu0 0.0
        %595 = vmatprep.subr.mxu0 0.0
        %596 = vmatpush1.msra.mxu0 0.0
        %597 = vmatprep.subr.mxu0 0.0
        %598 = vmatpush1.msra.mxu0 0.0
        %599 = vmatprep.mubr.f32.mxu0 0.0
        %600 = vmatmul.mubr.f32.gmra.mrb[0].mxu0 %v436
        %v601 = vpop.f32.mrb[0].mxu0
        %v602 = vadd.f32 %v432, %v601
        %v603 = vpop.f32.mrb[0].mxu0
        %604 = vmatprep.mubr.f32.mxu0 0.0
        %605 = vmatmul.mubr.f32.gmra.mrb[0].mxu0 %v439
        %v606 = vpop.f32.mrb[0].mxu0
        %v607 = vadd.f32 %v432, %v606
        %v608 = vpop.f32.mrb[0].mxu0
        %609 = vmatprep.mubr.f32.mxu0 0.0
        %610 = vmatmul.mubr.f32.gmra.mrb[0].mxu0 %v442
        %v611 = vpop.f32.mrb[0].mxu0
        %v612 = vadd.f32 %v432, %v611
        %v613 = vpop.f32.mrb[0].mxu0
        %614 = vmatprep.mubr.f32.mxu0 0.0
        %615 = vmatmul.mubr.f32.gmra.mrb[0].mxu0 %v445
        %v616 = vpop.f32.mrb[0].mxu0
        %v617 = vadd.f32 %v432, %v616
        %v618 = vpop.f32.mrb[0].mxu0
        %619 = vmatprep.mubr.f32.mxu0 0.0
        %620 = vmatmul.mubr.f32.gmra.mrb[0].mxu0 %v448
        %v621 = vpop.f32.mrb[0].mxu0
        %v622 = vadd.f32 %v432, %v621
        %v623 = vpop.f32.mrb[0].mxu0
        %624 = vmatprep.mubr.f32.mxu0 0.0
        %625 = vmatmul.mubr.f32.gmra.mrb[0].mxu0 %v451
        %v626 = vpop.f32.mrb[0].mxu0
        %v627 = vadd.f32 %v432, %v626
        %v628 = vpop.f32.mrb[0].mxu0
        %629 = vmatprep.mubr.f32.mxu0 0.0
        %630 = vmatmul.mubr.f32.gmra.mrb[0].mxu0 %v454
        %v631 = vpop.f32.mrb[0].mxu0
        %v632 = vadd.f32 %v432, %v631
        %v633 = vpop.f32.mrb[0].mxu0
        %634 = vmatprep.mubr.f32.mxu0 0.0
        %635 = vmatmul.mubr.f32.gmra.mrb[0].mxu0 %v457
        %v636 = vpop.f32.mrb[0].mxu0
        %v637 = vadd.f32 %v432, %v636
        %v638 = vpop.f32.mrb[0].mxu0
        %639 = vmatprep.mubr.f32.mxu0 0.0
        %640 = vmatmul.mubr.f32.gmra.mrb[0].mxu0 %v460
        %v641 = vpop.f32.mrb[0].mxu0
        %v642 = vadd.f32 %v432, %v641
        %v643 = vpop.f32.mrb[0].mxu0
        %644 = vmatprep.mubr.f32.mxu0 0.0
        %645 = vmatmul.mubr.f32.gmra.mrb[0].mxu0 %v463
        %v646 = vpop.f32.mrb[0].mxu0
        %v647 = vadd.f32 %v432, %v646
        %v648 = vpop.f32.mrb[0].mxu0
        %649 = vmatprep.mubr.f32.mxu0 0.0
        %650 = vmatmul.mubr.f32.gmra.mrb[0].mxu0 %v466
        %v651 = vpop.f32.mrb[0].mxu0
        %v652 = vadd.f32 %v432, %v651
        %v653 = vpop.f32.mrb[0].mxu0
        %654 = vmatprep.mubr.f32.mxu0 0.0
        %655 = vmatmul.mubr.f32.gmra.mrb[0].mxu0 %v469
        %v656 = vpop.f32.mrb[0].mxu0
        %v657 = vadd.f32 %v432, %v656
        %v658 = vpop.f32.mrb[0].mxu0
        %659 = vmatprep.mubr.f32.mxu0 0.0
        %660 = vmatmul.mubr.f32.gmra.mrb[0].mxu0 %v472
        %v661 = vpop.f32.mrb[0].mxu0
        %v662 = vadd.f32 %v432, %v661
        %v663 = vpop.f32.mrb[0].mxu0
        %664 = vmatprep.mubr.f32.mxu0 0.0
        %665 = vmatmul.mubr.f32.gmra.mrb[0].mxu0 %v475
        %v666 = vpop.f32.mrb[0].mxu0
        %v667 = vadd.f32 %v432, %v666
        %v668 = vpop.f32.mrb[0].mxu0
        %669 = vmatprep.mubr.f32.mxu0 0.0
        %670 = vmatmul.mubr.f32.gmra.mrb[0].mxu0 %v478
        %v671 = vpop.f32.mrb[0].mxu0
        %v672 = vadd.f32 %v432, %v671
        %v673 = vpop.f32.mrb[0].mxu0
        %674 = vmatprep.mubr.f32.mxu0 0.0
        %675 = vmatmul.mubr.f32.gmra.mrb[0].mxu0 %v481
        %v676 = vpop.f32.mrb[0].mxu0
        %v677 = vadd.f32 %v432, %v676
        %v678 = vpop.f32.mrb[0].mxu0
        %679 = vmatprep.mubr.f32.mxu0 0.0
        %680 = vmatmul.mubr.f32.gmra.mrb[0].mxu0 %v484
        %v681 = vpop.f32.mrb[0].mxu0
        %v682 = vadd.f32 %v432, %v681
        %v683 = vpop.f32.mrb[0].mxu0
        %684 = vmatprep.mubr.f32.mxu0 0.0
        %685 = vmatmul.mubr.f32.gmra.mrb[0].mxu0 %v487
        %v686 = vpop.f32.mrb[0].mxu0
        %v687 = vadd.f32 %v432, %v686
        %v688 = vpop.f32.mrb[0].mxu0
        %689 = vmatprep.mubr.f32.mxu0 0.0
        %690 = vmatmul.mubr.f32.gmra.mrb[0].mxu0 %v490
        %v691 = vpop.f32.mrb[0].mxu0
        %v692 = vadd.f32 %v432, %v691
        %v693 = vpop.f32.mrb[0].mxu0
        %694 = vmatprep.mubr.f32.mxu0 0.0
        %695 = vmatmul.mubr.f32.gmra.mrb[0].mxu0 %v493
        %v696 = vpop.f32.mrb[0].mxu0
        %v697 = vadd.f32 %v432, %v696
        %v698 = vpop.f32.mrb[0].mxu0
        %699 = vmatprep.mubr.f32.mxu0 0.0
        %700 = vmatmul.mubr.f32.gmra.mrb[0].mxu0 %v496
        %v701 = vpop.f32.mrb[0].mxu0
        %v702 = vadd.f32 %v432, %v701
        %v703 = vpop.f32.mrb[0].mxu0
        %704 = vmatprep.mubr.f32.mxu0 0.0
        %705 = vmatmul.mubr.f32.gmra.mrb[0].mxu0 %v499
        %v706 = vpop.f32.mrb[0].mxu0
        %v707 = vadd.f32 %v432, %v706
        %v708 = vpop.f32.mrb[0].mxu0
        %709 = vmatprep.mubr.f32.mxu0 0.0
        %710 = vmatmul.mubr.f32.gmra.mrb[0].mxu0 %v502
        %v711 = vpop.f32.mrb[0].mxu0
        %v712 = vadd.f32 %v432, %v711
        %v713 = vpop.f32.mrb[0].mxu0
        %714 = vmatprep.mubr.f32.mxu0 0.0
        %715 = vmatmul.mubr.f32.gmra.mrb[0].mxu0 %v505
        %v716 = vpop.f32.mrb[0].mxu0
        %v717 = vadd.f32 %v432, %v716
        %v718 = vpop.f32.mrb[0].mxu0
        %719 = vmatprep.mubr.f32.mxu0 0.0
        %720 = vmatmul.mubr.f32.gmra.mrb[0].mxu0 %v508
        %v721 = vpop.f32.mrb[0].mxu0
        %v722 = vadd.f32 %v432, %v721
        %v723 = vpop.f32.mrb[0].mxu0
        %724 = vmatprep.mubr.f32.mxu0 0.0
        %725 = vmatmul.mubr.f32.gmra.mrb[0].mxu0 %v511
        %v726 = vpop.f32.mrb[0].mxu0
        %v727 = vadd.f32 %v432, %v726
        %v728 = vpop.f32.mrb[0].mxu0
        %729 = vmatprep.mubr.f32.mxu0 0.0
        %730 = vmatmul.mubr.f32.gmra.mrb[0].mxu0 %v514
        %v731 = vpop.f32.mrb[0].mxu0
        %v732 = vadd.f32 %v432, %v731
        %v733 = vpop.f32.mrb[0].mxu0
        %734 = vmatprep.mubr.f32.mxu0 0.0
        %735 = vmatmul.mubr.f32.gmra.mrb[0].mxu0 %v517
        %v736 = vpop.f32.mrb[0].mxu0
        %v737 = vadd.f32 %v432, %v736
        %v738 = vpop.f32.mrb[0].mxu0
        %739 = vmatprep.mubr.f32.mxu0 0.0
        %740 = vmatmul.mubr.f32.gmra.mrb[0].mxu0 %v520
        %v741 = vpop.f32.mrb[0].mxu0
        %v742 = vadd.f32 %v432, %v741
        %v743 = vpop.f32.mrb[0].mxu0
        %744 = vmatprep.mubr.f32.mxu0 0.0
        %745 = vmatmul.mubr.f32.gmra.mrb[0].mxu0 %v523
        %v746 = vpop.f32.mrb[0].mxu0
        %v747 = vadd.f32 %v432, %v746
        %v748 = vpop.f32.mrb[0].mxu0
        %749 = vmatprep.mubr.f32.mxu0 0.0
        %750 = vmatmul.mubr.f32.gmra.mrb[0].mxu0 %v526
        %v751 = vpop.f32.mrb[0].mxu0
        %v752 = vadd.f32 %v432, %v751
        %v753 = vpop.f32.mrb[0].mxu0
        %754 = vmatprep.mubr.f32.mxu0 0.0
        %755 = vmatmul.mubr.f32.gmra.mrb[0].mxu0 %v529
        %v756 = vpop.f32.mrb[0].mxu0
        %v757 = vadd.f32 %v432, %v756
        %v758 = vpop.f32.mrb[0].mxu0
        %759 = vdwg.mxu0
        %vm760 = vcmp.ge.f32.partialorder %v602, 0.0
        %vm761 = vcmp.ge.f32.partialorder %v607, 0.0
        %vm762 = vcmp.ge.f32.partialorder %v612, 0.0
        %vm763 = vcmp.ge.f32.partialorder %v617, 0.0
        %vm764 = vcmp.ge.f32.partialorder %v622, 0.0
        %vm765 = vcmp.ge.f32.partialorder %v627, 0.0
        %vm766 = vcmp.ge.f32.partialorder %v632, 0.0
        %vm767 = vcmp.ge.f32.partialorder %v637, 0.0
        %vm768 = vcmp.ge.f32.partialorder %v642, 0.0
        %vm769 = vcmp.ge.f32.partialorder %v647, 0.0
        %vm770 = vcmp.ge.f32.partialorder %v652, 0.0
        %vm771 = vcmp.ge.f32.partialorder %v657, 0.0
        %vm772 = vcmp.ge.f32.partialorder %v662, 0.0
        %vm773 = vcmp.ge.f32.partialorder %v667, 0.0
        %vm774 = vcmp.ge.f32.partialorder %v672, 0.0
        %vm775 = vcmp.ge.f32.partialorder %v677, 0.0
        %vm776 = vcmp.ge.f32.partialorder %v682, 0.0
        %vm777 = vcmp.ge.f32.partialorder %v687, 0.0
        %vm778 = vcmp.ge.f32.partialorder %v692, 0.0
        %vm779 = vcmp.ge.f32.partialorder %v697, 0.0
        %vm780 = vcmp.ge.f32.partialorder %v702, 0.0
        %vm781 = vcmp.ge.f32.partialorder %v707, 0.0
        %vm782 = vcmp.ge.f32.partialorder %v712, 0.0
        %vm783 = vcmp.ge.f32.partialorder %v717, 0.0
        %vm784 = vcmp.ge.f32.partialorder %v722, 0.0
        %vm785 = vcmp.ge.f32.partialorder %v727, 0.0
        %vm786 = vcmp.ge.f32.partialorder %v732, 0.0
        %vm787 = vcmp.ge.f32.partialorder %v737, 0.0
        %vm788 = vcmp.ge.f32.partialorder %v742, 0.0
        %vm789 = vcmp.ge.f32.partialorder %v747, 0.0
        %vm790 = vcmp.ge.f32.partialorder %v752, 0.0
        %vm791 = vcmp.ge.f32.partialorder %v757, 0.0
        %v793 = vlaneseq
        %v794 = vshrl.u32 %v793, 7
        %v795 = vsub.s32 0, %v794
        %v796 = vrot.slane %v338, %v795
        %v798 = vmul.f32 %v602, %v796
        %v799 = vmul.f32 %v607, %v796
        %v800 = vmul.f32 %v612, %v796
        %v801 = vmul.f32 %v617, %v796
        %v802 = vmul.f32 %v622, %v796
        %v803 = vmul.f32 %v627, %v796
        %v804 = vmul.f32 %v632, %v796
        %v805 = vmul.f32 %v637, %v796
        %v806 = vmul.f32 %v642, %v796
        %v807 = vmul.f32 %v647, %v796
        %v808 = vmul.f32 %v652, %v796
        %v809 = vmul.f32 %v657, %v796
        %v810 = vmul.f32 %v662, %v796
        %v811 = vmul.f32 %v667, %v796
        %v812 = vmul.f32 %v672, %v796
        %v813 = vmul.f32 %v677, %v796
        %v814 = vmul.f32 %v682, %v796
        %v815 = vmul.f32 %v687, %v796
        %v816 = vmul.f32 %v692, %v796
        %v817 = vmul.f32 %v697, %v796
        %v818 = vmul.f32 %v702, %v796
        %v819 = vmul.f32 %v707, %v796
        %v820 = vmul.f32 %v712, %v796
        %v821 = vmul.f32 %v717, %v796
        %v822 = vmul.f32 %v722, %v796
        %v823 = vmul.f32 %v727, %v796
        %v824 = vmul.f32 %v732, %v796
        %v825 = vmul.f32 %v737, %v796
        %v826 = vmul.f32 %v742, %v796
        %v827 = vmul.f32 %v747, %v796
        %v828 = vmul.f32 %v752, %v796
        %v829 = vmul.f32 %v757, %v796
        %v830 = vsel %vm760, %v602, %v798
        %v831 = vsel %vm761, %v607, %v799
        %v832 = vsel %vm762, %v612, %v800
        %v833 = vsel %vm763, %v617, %v801
        %v834 = vsel %vm764, %v622, %v802
        %v835 = vsel %vm765, %v627, %v803
        %v836 = vsel %vm766, %v632, %v804
        %v837 = vsel %vm767, %v637, %v805
        %v838 = vsel %vm768, %v642, %v806
        %v839 = vsel %vm769, %v647, %v807
        %v840 = vsel %vm770, %v652, %v808
        %v841 = vsel %vm771, %v657, %v809
        %v842 = vsel %vm772, %v662, %v810
        %v843 = vsel %vm773, %v667, %v811
        %v844 = vsel %vm774, %v672, %v812
        %v845 = vsel %vm775, %v677, %v813
        %v846 = vsel %vm776, %v682, %v814
        %v847 = vsel %vm777, %v687, %v815
        %v848 = vsel %vm778, %v692, %v816
        %v849 = vsel %vm779, %v697, %v817
        %v850 = vsel %vm780, %v702, %v818
        %v851 = vsel %vm781, %v707, %v819
        %v852 = vsel %vm782, %v712, %v820
        %v853 = vsel %vm783, %v717, %v821
        %v854 = vsel %vm784, %v722, %v822
        %v855 = vsel %vm785, %v727, %v823
        %v856 = vsel %vm786, %v732, %v824
        %v857 = vsel %vm787, %v737, %v825
        %v858 = vsel %vm788, %v742, %v826
        %v859 = vsel %vm789, %v747, %v827
        %v860 = vsel %vm790, %v752, %v828
        %v861 = vsel %vm791, %v757, %v829
        %862 = vst.msk [vmem:[%s386] sm:$0xff] %vm345, %v830
        %863 = vst.msk [vmem:[%s386 + $0x10] sm:$0xff] %vm345, %v831
        %864 = vst.msk [vmem:[%s386 + $0x20] sm:$0xff] %vm345, %v832
        %865 = vst.msk [vmem:[%s386 + $0x30] sm:$0xff] %vm345, %v833
        %866 = vst.msk [vmem:[%s386 + $0x40] sm:$0xff] %vm345, %v834
        %867 = vst.msk [vmem:[%s386 + $0x50] sm:$0xff] %vm345, %v835
        %868 = vst.msk [vmem:[%s386 + $0x60] sm:$0xff] %vm345, %v836
        %869 = vst.msk [vmem:[%s386 + $0x70] sm:$0xff] %vm345, %v837
        %870 = vst.msk [vmem:[%s376 + $0x1] sm:$0xff] %vm345, %v838
        %871 = vst.msk [vmem:[%s376 + $0x11] sm:$0xff] %vm345, %v839
        %872 = vst.msk [vmem:[%s376 + $0x21] sm:$0xff] %vm345, %v840
        %873 = vst.msk [vmem:[%s376 + $0x31] sm:$0xff] %vm345, %v841
        %874 = vst.msk [vmem:[%s376 + $0x41] sm:$0xff] %vm345, %v842
        %875 = vst.msk [vmem:[%s376 + $0x51] sm:$0xff] %vm345, %v843
        %876 = vst.msk [vmem:[%s376 + $0x61] sm:$0xff] %vm345, %v844
        %877 = vst.msk [vmem:[%s376 + $0x71] sm:$0xff] %vm345, %v845
        %s878 = scalar_lea.vmem [#allocation2], 160
        %879 = vst.msk [vmem:[%s878] sm:$0xff] %vm345, %v846
        %880 = vst.msk [vmem:[%s878 + $0x10] sm:$0xff] %vm345, %v847
        %881 = vst.msk [vmem:[%s878 + $0x20] sm:$0xff] %vm345, %v848
        %882 = vst.msk [vmem:[%s878 + $0x30] sm:$0xff] %vm345, %v849
        %883 = vst.msk [vmem:[%s878 + $0x40] sm:$0xff] %vm345, %v850
        %884 = vst.msk [vmem:[%s878 + $0x50] sm:$0xff] %vm345, %v851
        %885 = vst.msk [vmem:[%s878 + $0x60] sm:$0xff] %vm345, %v852
        %886 = vst.msk [vmem:[%s878 + $0x70] sm:$0xff] %vm345, %v853
        %s887 = scalar_lea.vmem [#allocation2], 16
        %888 = vst.msk [vmem:[%s887 + $0x1] sm:$0xff] %vm345, %v854
        %889 = vst.msk [vmem:[%s887 + $0x11] sm:$0xff] %vm345, %v855
        %890 = vst.msk [vmem:[%s887 + $0x21] sm:$0xff] %vm345, %v856
        %891 = vst.msk [vmem:[%s887 + $0x31] sm:$0xff] %vm345, %v857
        %892 = vst.msk [vmem:[%s887 + $0x41] sm:$0xff] %vm345, %v858
        %893 = vst.msk [vmem:[%s887 + $0x51] sm:$0xff] %vm345, %v859
        %894 = vst.msk [vmem:[%s887 + $0x61] sm:$0xff] %vm345, %v860
        %895 = vst.msk [vmem:[%s887 + $0x71] sm:$0xff] %vm345, %v861
        %v896 = vld [vmem:[#allocation2] sm:$0xff]
        %v897 = vld [vmem:[#allocation2 + $0x8] sm:$0x1]
        %v898 = vld [vmem:[#allocation2 + $0x10] sm:$0xff]
        %v899 = vld [vmem:[#allocation2 + $0x18] sm:$0x1]
        %v900 = vld [vmem:[#allocation2 + $0x20] sm:$0xff]
        %v901 = vld [vmem:[#allocation2 + $0x28] sm:$0x1]
        %v902 = vld [vmem:[#allocation2 + $0x30] sm:$0xff]
        %v903 = vld [vmem:[#allocation2 + $0x38] sm:$0x1]
        %v904 = vld [vmem:[#allocation2 + $0x40] sm:$0xff]
        %v905 = vld [vmem:[#allocation2 + $0x48] sm:$0x1]
        %v906 = vld [vmem:[#allocation2 + $0x50] sm:$0xff]
        %v907 = vld [vmem:[#allocation2 + $0x58] sm:$0x1]
        %v908 = vld [vmem:[#allocation2 + $0x60] sm:$0xff]
        %v909 = vld [vmem:[#allocation2 + $0x68] sm:$0x1]
        %v910 = vld [vmem:[#allocation2 + $0x70] sm:$0xff]
        %v911 = vld [vmem:[#allocation2 + $0x78] sm:$0x1]
        %v912 = vld [vmem:[%s352] sm:$0xff]
        %v913 = vld [vmem:[%s352 + $0x10] sm:$0xff]
        %v914 = vld [vmem:[%s352 + $0x20] sm:$0xff]
        %v915 = vld [vmem:[%s352 + $0x30] sm:$0xff]
        %v916 = vld [vmem:[%s352 + $0x40] sm:$0xff]
        %v917 = vld [vmem:[%s352 + $0x50] sm:$0xff]
        %v918 = vld [vmem:[%s352 + $0x60] sm:$0xff]
        %v919 = vld [vmem:[%s352 + $0x70] sm:$0xff]
        %v920 = vlaneseq
        %v921 = vshrl.u32 %v920, 7
        %v922 = vsub.s32 0, %v921
        %v923 = vrot.slane %v339, %v922
        %v924 = vmul.f32 %v896, %v923
        %v925 = vmul.f32 %v898, %v923
        %v926 = vmul.f32 %v900, %v923
        %v927 = vmul.f32 %v902, %v923
        %v928 = vmul.f32 %v904, %v923
        %v929 = vmul.f32 %v906, %v923
        %v930 = vmul.f32 %v908, %v923
        %v931 = vmul.f32 %v910, %v923
        %v932 = vadd.f32 %v924, 0.0
        %v933 = vadd.f32 %v925, 0.0
        %v934 = vadd.f32 %v926, 0.0
        %v935 = vadd.f32 %v927, 0.0
        %v936 = vadd.f32 %v928, 0.0
        %v937 = vadd.f32 %v929, 0.0
        %v938 = vadd.f32 %v930, 0.0
        %v939 = vadd.f32 %v931, 0.0
        %v940 = vlaneseq
        %v941 = vshrl.u32 %v940, 7
        %v942 = vsub.s32 1, %v941
        %v943 = vrot.slane %v339, %v942
        %v944 = vmul.f32 %v912, %v943
        %v945 = vmul.f32 %v913, %v943
        %v946 = vmul.f32 %v914, %v943
        %v947 = vmul.f32 %v915, %v943
        %v948 = vmul.f32 %v916, %v943
        %v949 = vmul.f32 %v917, %v943
        %v950 = vmul.f32 %v918, %v943
        %v951 = vmul.f32 %v919, %v943
        %v952 = vadd.f32 %v932, %v944
        %v953 = vadd.f32 %v933, %v945
        %v954 = vadd.f32 %v934, %v946
        %v955 = vadd.f32 %v935, %v947
        %v956 = vadd.f32 %v936, %v948
        %v957 = vadd.f32 %v937, %v949
        %v958 = vadd.f32 %v938, %v950
        %v959 = vadd.f32 %v939, %v951
        %v960 = vlaneseq
        %v961 = vshrl.u32 %v960, 7
        %v962 = vsub.s32 2, %v961
        %v963 = vrot.slane %v339, %v962
        %v964 = vmul.f32 %v896, %v963
        %v965 = vmul.f32 %v897, %v963
        %v966 = vmul.f32 %v898, %v963
        %v967 = vmul.f32 %v899, %v963
        %v968 = vmul.f32 %v900, %v963
        %v969 = vmul.f32 %v901, %v963
        %v970 = vmul.f32 %v902, %v963
        %v971 = vmul.f32 %v903, %v963
        %v972 = vmul.f32 %v904, %v963
        %v973 = vmul.f32 %v905, %v963
        %v974 = vmul.f32 %v906, %v963
        %v975 = vmul.f32 %v907, %v963
        %v976 = vmul.f32 %v908, %v963
        %v977 = vmul.f32 %v909, %v963
        %v978 = vmul.f32 %v910, %v963
        %v979 = vmul.f32 %v911, %v963
        %vm996 = vcmask 1046528
        %v997 = vrot.slane %v964, 1
        %v998 = vrot.slane %v965, 1
        %v999 = vsel %vm996, %v997, %v998
        %v1000 = vrot.slane %v966, 1
        %v1001 = vrot.slane %v967, 1
        %v1002 = vsel %vm996, %v1000, %v1001
        %v1003 = vrot.slane %v968, 1
        %v1004 = vrot.slane %v969, 1
        %v1005 = vsel %vm996, %v1003, %v1004
        %v1006 = vrot.slane %v970, 1
        %v1007 = vrot.slane %v971, 1
        %v1008 = vsel %vm996, %v1006, %v1007
        %v1009 = vrot.slane %v972, 1
        %v1010 = vrot.slane %v973, 1
        %v1011 = vsel %vm996, %v1009, %v1010
        %v1012 = vrot.slane %v974, 1
        %v1013 = vrot.slane %v975, 1
        %v1014 = vsel %vm996, %v1012, %v1013
        %v1015 = vrot.slane %v976, 1
        %v1016 = vrot.slane %v977, 1
        %v1017 = vsel %vm996, %v1015, %v1016
        %v1018 = vrot.slane %v978, 1
        %v1019 = vrot.slane %v979, 1
        %v1020 = vsel %vm996, %v1018, %v1019
        %v1029 = vadd.f32 %v952, %v999
        %v1030 = vadd.f32 %v953, %v1002
        %v1031 = vadd.f32 %v954, %v1005
        %v1032 = vadd.f32 %v955, %v1008
        %v1033 = vadd.f32 %v956, %v1011
        %v1034 = vadd.f32 %v957, %v1014
        %v1035 = vadd.f32 %v958, %v1017
        %v1036 = vadd.f32 %v959, %v1020
        %v1037 = vld [vmem:[%s376] sm:$0xff]
        %v1038 = vld [vmem:[%s376 + $0x8] sm:$0x1]
        %v1039 = vld [vmem:[%s376 + $0x10] sm:$0xff]
        %v1040 = vld [vmem:[%s376 + $0x18] sm:$0x1]
        %v1041 = vld [vmem:[%s376 + $0x20] sm:$0xff]
        %v1042 = vld [vmem:[%s376 + $0x28] sm:$0x1]
        %v1043 = vld [vmem:[%s376 + $0x30] sm:$0xff]
        %v1044 = vld [vmem:[%s376 + $0x38] sm:$0x1]
        %v1045 = vld [vmem:[%s376 + $0x40] sm:$0xff]
        %v1046 = vld [vmem:[%s376 + $0x48] sm:$0x1]
        %v1047 = vld [vmem:[%s376 + $0x50] sm:$0xff]
        %v1048 = vld [vmem:[%s376 + $0x58] sm:$0x1]
        %v1049 = vld [vmem:[%s376 + $0x60] sm:$0xff]
        %v1050 = vld [vmem:[%s376 + $0x68] sm:$0x1]
        %v1051 = vld [vmem:[%s376 + $0x70] sm:$0xff]
        %v1052 = vld [vmem:[%s376 + $0x78] sm:$0x1]
        %v1053 = vld [vmem:[%s386] sm:$0xff]
        %v1054 = vld [vmem:[%s386 + $0x10] sm:$0xff]
        %v1055 = vld [vmem:[%s386 + $0x20] sm:$0xff]
        %v1056 = vld [vmem:[%s386 + $0x30] sm:$0xff]
        %v1057 = vld [vmem:[%s386 + $0x40] sm:$0xff]
        %v1058 = vld [vmem:[%s386 + $0x50] sm:$0xff]
        %v1059 = vld [vmem:[%s386 + $0x60] sm:$0xff]
        %v1060 = vld [vmem:[%s386 + $0x70] sm:$0xff]
        %v1061 = vlaneseq
        %v1062 = vshrl.u32 %v1061, 7
        %v1063 = vsub.s32 3, %v1062
        %v1064 = vrot.slane %v339, %v1063
        %v1065 = vmul.f32 %v1037, %v1064
        %v1066 = vmul.f32 %v1039, %v1064
        %v1067 = vmul.f32 %v1041, %v1064
        %v1068 = vmul.f32 %v1043, %v1064
        %v1069 = vmul.f32 %v1045, %v1064
        %v1070 = vmul.f32 %v1047, %v1064
        %v1071 = vmul.f32 %v1049, %v1064
        %v1072 = vmul.f32 %v1051, %v1064
        %v1073 = vadd.f32 %v1029, %v1065
        %v1074 = vadd.f32 %v1030, %v1066
        %v1075 = vadd.f32 %v1031, %v1067
        %v1076 = vadd.f32 %v1032, %v1068
        %v1077 = vadd.f32 %v1033, %v1069
        %v1078 = vadd.f32 %v1034, %v1070
        %v1079 = vadd.f32 %v1035, %v1071
        %v1080 = vadd.f32 %v1036, %v1072
        %v1081 = vlaneseq
        %v1082 = vshrl.u32 %v1081, 7
        %v1083 = vsub.s32 4, %v1082
        %v1084 = vrot.slane %v339, %v1083
        %v1085 = vmul.f32 %v1053, %v1084
        %v1086 = vmul.f32 %v1054, %v1084
        %v1087 = vmul.f32 %v1055, %v1084
        %v1088 = vmul.f32 %v1056, %v1084
        %v1089 = vmul.f32 %v1057, %v1084
        %v1090 = vmul.f32 %v1058, %v1084
        %v1091 = vmul.f32 %v1059, %v1084
        %v1092 = vmul.f32 %v1060, %v1084
        %v1093 = vadd.f32 %v1073, %v1085
        %v1094 = vadd.f32 %v1074, %v1086
        %v1095 = vadd.f32 %v1075, %v1087
        %v1096 = vadd.f32 %v1076, %v1088
        %v1097 = vadd.f32 %v1077, %v1089
        %v1098 = vadd.f32 %v1078, %v1090
        %v1099 = vadd.f32 %v1079, %v1091
        %v1100 = vadd.f32 %v1080, %v1092
        %v1101 = vlaneseq
        %v1102 = vshrl.u32 %v1101, 7
        %v1103 = vsub.s32 5, %v1102
        %v1104 = vrot.slane %v339, %v1103
        %v1105 = vmul.f32 %v1037, %v1104
        %v1106 = vmul.f32 %v1038, %v1104
        %v1107 = vmul.f32 %v1039, %v1104
        %v1108 = vmul.f32 %v1040, %v1104
        %v1109 = vmul.f32 %v1041, %v1104
        %v1110 = vmul.f32 %v1042, %v1104
        %v1111 = vmul.f32 %v1043, %v1104
        %v1112 = vmul.f32 %v1044, %v1104
        %v1113 = vmul.f32 %v1045, %v1104
        %v1114 = vmul.f32 %v1046, %v1104
        %v1115 = vmul.f32 %v1047, %v1104
        %v1116 = vmul.f32 %v1048, %v1104
        %v1117 = vmul.f32 %v1049, %v1104
        %v1118 = vmul.f32 %v1050, %v1104
        %v1119 = vmul.f32 %v1051, %v1104
        %v1120 = vmul.f32 %v1052, %v1104
        %v1137 = vrot.slane %v1105, 1
        %v1138 = vrot.slane %v1106, 1
        %v1139 = vsel %vm996, %v1137, %v1138
        %v1140 = vrot.slane %v1107, 1
        %v1141 = vrot.slane %v1108, 1
        %v1142 = vsel %vm996, %v1140, %v1141
        %v1143 = vrot.slane %v1109, 1
        %v1144 = vrot.slane %v1110, 1
        %v1145 = vsel %vm996, %v1143, %v1144
        %v1146 = vrot.slane %v1111, 1
        %v1147 = vrot.slane %v1112, 1
        %v1148 = vsel %vm996, %v1146, %v1147
        %v1149 = vrot.slane %v1113, 1
        %v1150 = vrot.slane %v1114, 1
        %v1151 = vsel %vm996, %v1149, %v1150
        %v1152 = vrot.slane %v1115, 1
        %v1153 = vrot.slane %v1116, 1
        %v1154 = vsel %vm996, %v1152, %v1153
        %v1155 = vrot.slane %v1117, 1
        %v1156 = vrot.slane %v1118, 1
        %v1157 = vsel %vm996, %v1155, %v1156
        %v1158 = vrot.slane %v1119, 1
        %v1159 = vrot.slane %v1120, 1
        %v1160 = vsel %vm996, %v1158, %v1159
        %v1169 = vadd.f32 %v1093, %v1139
        %v1170 = vadd.f32 %v1094, %v1142
        %v1171 = vadd.f32 %v1095, %v1145
        %v1172 = vadd.f32 %v1096, %v1148
        %v1173 = vadd.f32 %v1097, %v1151
        %v1174 = vadd.f32 %v1098, %v1154
        %v1175 = vadd.f32 %v1099, %v1157
        %v1176 = vadd.f32 %v1100, %v1160
        %v1177 = vld [vmem:[%s887] sm:$0xff]
        %v1178 = vld [vmem:[%s887 + $0x8] sm:$0x1]
        %v1179 = vld [vmem:[%s887 + $0x10] sm:$0xff]
        %v1180 = vld [vmem:[%s887 + $0x18] sm:$0x1]
        %v1181 = vld [vmem:[%s887 + $0x20] sm:$0xff]
        %v1182 = vld [vmem:[%s887 + $0x28] sm:$0x1]
        %v1183 = vld [vmem:[%s887 + $0x30] sm:$0xff]
        %v1184 = vld [vmem:[%s887 + $0x38] sm:$0x1]
        %v1185 = vld [vmem:[%s887 + $0x40] sm:$0xff]
        %v1186 = vld [vmem:[%s887 + $0x48] sm:$0x1]
        %v1187 = vld [vmem:[%s887 + $0x50] sm:$0xff]
        %v1188 = vld [vmem:[%s887 + $0x58] sm:$0x1]
        %v1189 = vld [vmem:[%s887 + $0x60] sm:$0xff]
        %v1190 = vld [vmem:[%s887 + $0x68] sm:$0x1]
        %v1191 = vld [vmem:[%s887 + $0x70] sm:$0xff]
        %v1192 = vld [vmem:[%s887 + $0x78] sm:$0x1]
        %v1193 = vld [vmem:[%s878] sm:$0xff]
        %v1194 = vld [vmem:[%s878 + $0x10] sm:$0xff]
        %v1195 = vld [vmem:[%s878 + $0x20] sm:$0xff]
        %v1196 = vld [vmem:[%s878 + $0x30] sm:$0xff]
        %v1197 = vld [vmem:[%s878 + $0x40] sm:$0xff]
        %v1198 = vld [vmem:[%s878 + $0x50] sm:$0xff]
        %v1199 = vld [vmem:[%s878 + $0x60] sm:$0xff]
        %v1200 = vld [vmem:[%s878 + $0x70] sm:$0xff]
        %v1201 = vlaneseq
        %v1202 = vshrl.u32 %v1201, 7
        %v1203 = vsub.s32 6, %v1202
        %v1204 = vrot.slane %v339, %v1203
        %v1205 = vmul.f32 %v1177, %v1204
        %v1206 = vmul.f32 %v1179, %v1204
        %v1207 = vmul.f32 %v1181, %v1204
        %v1208 = vmul.f32 %v1183, %v1204
        %v1209 = vmul.f32 %v1185, %v1204
        %v1210 = vmul.f32 %v1187, %v1204
        %v1211 = vmul.f32 %v1189, %v1204
        %v1212 = vmul.f32 %v1191, %v1204
        %v1213 = vadd.f32 %v1169, %v1205
        %v1214 = vadd.f32 %v1170, %v1206
        %v1215 = vadd.f32 %v1171, %v1207
        %v1216 = vadd.f32 %v1172, %v1208
        %v1217 = vadd.f32 %v1173, %v1209
        %v1218 = vadd.f32 %v1174, %v1210
        %v1219 = vadd.f32 %v1175, %v1211
        %v1220 = vadd.f32 %v1176, %v1212
        %v1221 = vlaneseq
        %v1222 = vshrl.u32 %v1221, 7
        %v1223 = vsub.s32 7, %v1222
        %v1224 = vrot.slane %v339, %v1223
        %v1225 = vmul.f32 %v1193, %v1224
        %v1226 = vmul.f32 %v1194, %v1224
        %v1227 = vmul.f32 %v1195, %v1224
        %v1228 = vmul.f32 %v1196, %v1224
        %v1229 = vmul.f32 %v1197, %v1224
        %v1230 = vmul.f32 %v1198, %v1224
        %v1231 = vmul.f32 %v1199, %v1224
        %v1232 = vmul.f32 %v1200, %v1224
        %v1233 = vadd.f32 %v1213, %v1225
        %v1234 = vadd.f32 %v1214, %v1226
        %v1235 = vadd.f32 %v1215, %v1227
        %v1236 = vadd.f32 %v1216, %v1228
        %v1237 = vadd.f32 %v1217, %v1229
        %v1238 = vadd.f32 %v1218, %v1230
        %v1239 = vadd.f32 %v1219, %v1231
        %v1240 = vadd.f32 %v1220, %v1232
        %v1241 = vlaneseq
        %v1242 = vshrl.u32 %v1241, 7
        %v1243 = vsub.s32 0, %v1242
        %v1244 = vrot.slane %v340, %v1243
        %v1245 = vmul.f32 %v1177, %v1244
        %v1246 = vmul.f32 %v1178, %v1244
        %v1247 = vmul.f32 %v1179, %v1244
        %v1248 = vmul.f32 %v1180, %v1244
        %v1249 = vmul.f32 %v1181, %v1244
        %v1250 = vmul.f32 %v1182, %v1244
        %v1251 = vmul.f32 %v1183, %v1244
        %v1252 = vmul.f32 %v1184, %v1244
        %v1253 = vmul.f32 %v1185, %v1244
        %v1254 = vmul.f32 %v1186, %v1244
        %v1255 = vmul.f32 %v1187, %v1244
        %v1256 = vmul.f32 %v1188, %v1244
        %v1257 = vmul.f32 %v1189, %v1244
        %v1258 = vmul.f32 %v1190, %v1244
        %v1259 = vmul.f32 %v1191, %v1244
        %v1260 = vmul.f32 %v1192, %v1244
        %v1277 = vrot.slane %v1245, 1
        %v1278 = vrot.slane %v1246, 1
        %v1279 = vsel %vm996, %v1277, %v1278
        %v1280 = vrot.slane %v1247, 1
        %v1281 = vrot.slane %v1248, 1
        %v1282 = vsel %vm996, %v1280, %v1281
        %v1283 = vrot.slane %v1249, 1
        %v1284 = vrot.slane %v1250, 1
        %v1285 = vsel %vm996, %v1283, %v1284
        %v1286 = vrot.slane %v1251, 1
        %v1287 = vrot.slane %v1252, 1
        %v1288 = vsel %vm996, %v1286, %v1287
        %v1289 = vrot.slane %v1253, 1
        %v1290 = vrot.slane %v1254, 1
        %v1291 = vsel %vm996, %v1289, %v1290
        %v1292 = vrot.slane %v1255, 1
        %v1293 = vrot.slane %v1256, 1
        %v1294 = vsel %vm996, %v1292, %v1293
        %v1295 = vrot.slane %v1257, 1
        %v1296 = vrot.slane %v1258, 1
        %v1297 = vsel %vm996, %v1295, %v1296
        %v1298 = vrot.slane %v1259, 1
        %v1299 = vrot.slane %v1260, 1
        %v1300 = vsel %vm996, %v1298, %v1299
        %v1309 = vadd.f32 %v1233, %v1279
        %v1310 = vadd.f32 %v1234, %v1282
        %v1311 = vadd.f32 %v1235, %v1285
        %v1312 = vadd.f32 %v1236, %v1288
        %v1313 = vadd.f32 %v1237, %v1291
        %v1314 = vadd.f32 %v1238, %v1294
        %v1315 = vadd.f32 %v1239, %v1297
        %v1316 = vadd.f32 %v1240, %v1300
        %v1318 = vlaneseq
        %v1319 = vshrl.u32 %v1318, 7
        %v1320 = vsub.s32 0, %v1319
        %v1321 = vrot.slane %v341, %v1320
        %v1323 = vadd.f32 %v1309, %v1321
        %v1324 = vadd.f32 %v1310, %v1321
        %v1325 = vadd.f32 %v1311, %v1321
        %v1326 = vadd.f32 %v1312, %v1321
        %v1327 = vadd.f32 %v1313, %v1321
        %v1328 = vadd.f32 %v1314, %v1321
        %v1329 = vadd.f32 %v1315, %v1321
        %v1330 = vadd.f32 %v1316, %v1321
        %vm1331 = vcmp.ge.f32.partialorder %v1323, 0.0
        %vm1332 = vcmp.ge.f32.partialorder %v1324, 0.0
        %vm1333 = vcmp.ge.f32.partialorder %v1325, 0.0
        %vm1334 = vcmp.ge.f32.partialorder %v1326, 0.0
        %vm1335 = vcmp.ge.f32.partialorder %v1327, 0.0
        %vm1336 = vcmp.ge.f32.partialorder %v1328, 0.0
        %vm1337 = vcmp.ge.f32.partialorder %v1329, 0.0
        %vm1338 = vcmp.ge.f32.partialorder %v1330, 0.0
        %v1340 = vlaneseq
        %v1341 = vshrl.u32 %v1340, 7
        %v1342 = vsub.s32 0, %v1341
        %v1343 = vrot.slane %v342, %v1342
        %v1345 = vmul.f32 %v1323, %v1343
        %v1346 = vmul.f32 %v1324, %v1343
        %v1347 = vmul.f32 %v1325, %v1343
        %v1348 = vmul.f32 %v1326, %v1343
        %v1349 = vmul.f32 %v1327, %v1343
        %v1350 = vmul.f32 %v1328, %v1343
        %v1351 = vmul.f32 %v1329, %v1343
        %v1352 = vmul.f32 %v1330, %v1343
        %v1353 = vsel %vm1331, %v1323, %v1345
        %v1354 = vsel %vm1332, %v1324, %v1346
        %v1355 = vsel %vm1333, %v1325, %v1347
        %v1356 = vsel %vm1334, %v1326, %v1348
        %v1357 = vsel %vm1335, %v1327, %v1349
        %v1358 = vsel %vm1336, %v1328, %v1350
        %v1359 = vsel %vm1337, %v1329, %v1351
        %v1360 = vsel %vm1338, %v1330, %v1352
        %v1362 = vlaneseq
        %v1363 = vshrl.u32 %v1362, 7
        %v1364 = vsub.s32 0, %v1363
        %v1365 = vrot.slane %v344, %v1364
        %v1368 = vsel %vm345, %v1353, 0
        %v1371 = vsel %vm345, %v1354, 0
        %v1374 = vsel %vm345, %v1355, 0
        %v1377 = vsel %vm345, %v1356, 0
        %v1380 = vsel %vm345, %v1357, 0
        %v1383 = vsel %vm345, %v1358, 0
        %v1386 = vsel %vm345, %v1359, 0
        %v1389 = vsel %vm345, %v1360, 0
        %1391 = vmatprep.subr.mxu0 0.0
        %1392 = vmatpush1.msra.mxu0 %v343
        %1393 = vmatprep.subr.mxu0 0.0
        %1394 = vmatpush1.msra.mxu0 0.0
        %1395 = vmatprep.subr.mxu0 0.0
        %1396 = vmatpush1.msra.mxu0 0.0
        %1397 = vmatprep.subr.mxu0 0.0
        %1398 = vmatpush1.msra.mxu0 0.0
        %1399 = vmatprep.subr.mxu0 0.0
        %1400 = vmatpush1.msra.mxu0 0.0
        %1401 = vmatprep.subr.mxu0 0.0
        %1402 = vmatpush1.msra.mxu0 0.0
        %1403 = vmatprep.subr.mxu0 0.0
        %1404 = vmatpush1.msra.mxu0 0.0
        %1405 = vmatprep.subr.mxu0 0.0
        %1406 = vmatpush1.msra.mxu0 0.0
        %1407 = vmatprep.subr.mxu0 0.0
        %1408 = vmatpush1.msra.mxu0 0.0
        %1409 = vmatprep.subr.mxu0 0.0
        %1410 = vmatpush1.msra.mxu0 0.0
        %1411 = vmatprep.subr.mxu0 0.0
        %1412 = vmatpush1.msra.mxu0 0.0
        %1413 = vmatprep.subr.mxu0 0.0
        %1414 = vmatpush1.msra.mxu0 0.0
        %1415 = vmatprep.subr.mxu0 0.0
        %1416 = vmatpush1.msra.mxu0 0.0
        %1417 = vmatprep.subr.mxu0 0.0
        %1418 = vmatpush1.msra.mxu0 0.0
        %1419 = vmatprep.subr.mxu0 0.0
        %1420 = vmatpush1.msra.mxu0 0.0
        %1421 = vmatprep.subr.mxu0 0.0
        %1422 = vmatpush1.msra.mxu0 0.0
        %1423 = vmatprep.subr.mxu0 0.0
        %1424 = vmatpush1.msra.mxu0 0.0
        %1425 = vmatprep.subr.mxu0 0.0
        %1426 = vmatpush1.msra.mxu0 0.0
        %1427 = vmatprep.subr.mxu0 0.0
        %1428 = vmatpush1.msra.mxu0 0.0
        %1429 = vmatprep.subr.mxu0 0.0
        %1430 = vmatpush1.msra.mxu0 0.0
        %1431 = vmatprep.subr.mxu0 0.0
        %1432 = vmatpush1.msra.mxu0 0.0
        %1433 = vmatprep.subr.mxu0 0.0
        %1434 = vmatpush1.msra.mxu0 0.0
        %1435 = vmatprep.subr.mxu0 0.0
        %1436 = vmatpush1.msra.mxu0 0.0
        %1437 = vmatprep.subr.mxu0 0.0
        %1438 = vmatpush1.msra.mxu0 0.0
        %1439 = vmatprep.subr.mxu0 0.0
        %1440 = vmatpush1.msra.mxu0 0.0
        %1441 = vmatprep.subr.mxu0 0.0
        %1442 = vmatpush1.msra.mxu0 0.0
        %1443 = vmatprep.subr.mxu0 0.0
        %1444 = vmatpush1.msra.mxu0 0.0
        %1445 = vmatprep.subr.mxu0 0.0
        %1446 = vmatpush1.msra.mxu0 0.0
        %1447 = vmatprep.subr.mxu0 0.0
        %1448 = vmatpush1.msra.mxu0 0.0
        %1449 = vmatprep.subr.mxu0 0.0
        %1450 = vmatpush1.msra.mxu0 0.0
        %1451 = vmatprep.subr.mxu0 0.0
        %1452 = vmatpush1.msra.mxu0 0.0
        %1453 = vmatprep.subr.mxu0 0.0
        %1454 = vmatpush1.msra.mxu0 0.0
        %1455 = vmatprep.mubr.f32.mxu0 0.0
        %1456 = vmatmul.mubr.f32.gmra.mrb[0].mxu0 %v1368
        %v1457 = vpop.f32.mrb[0].mxu0
        %v1458 = vadd.f32 %v1365, %v1457
        %v1459 = vpop.f32.mrb[0].mxu0
        %1460 = vmatprep.mubr.f32.mxu0 0.0
        %1461 = vmatmul.mubr.f32.gmra.mrb[0].mxu0 %v1371
        %v1462 = vpop.f32.mrb[0].mxu0
        %v1463 = vadd.f32 %v1365, %v1462
        %v1464 = vpop.f32.mrb[0].mxu0
        %1465 = vmatprep.mubr.f32.mxu0 0.0
        %1466 = vmatmul.mubr.f32.gmra.mrb[0].mxu0 %v1374
        %v1467 = vpop.f32.mrb[0].mxu0
        %v1468 = vadd.f32 %v1365, %v1467
        %v1469 = vpop.f32.mrb[0].mxu0
        %1470 = vmatprep.mubr.f32.mxu0 0.0
        %1471 = vmatmul.mubr.f32.gmra.mrb[0].mxu0 %v1377
        %v1472 = vpop.f32.mrb[0].mxu0
        %v1473 = vadd.f32 %v1365, %v1472
        %v1474 = vpop.f32.mrb[0].mxu0
        %1475 = vmatprep.mubr.f32.mxu0 0.0
        %1476 = vmatmul.mubr.f32.gmra.mrb[0].mxu0 %v1380
        %v1477 = vpop.f32.mrb[0].mxu0
        %v1478 = vadd.f32 %v1365, %v1477
        %v1479 = vpop.f32.mrb[0].mxu0
        %1480 = vmatprep.mubr.f32.mxu0 0.0
        %1481 = vmatmul.mubr.f32.gmra.mrb[0].mxu0 %v1383
        %v1482 = vpop.f32.mrb[0].mxu0
        %v1483 = vadd.f32 %v1365, %v1482
        %v1484 = vpop.f32.mrb[0].mxu0
        %1485 = vmatprep.mubr.f32.mxu0 0.0
        %1486 = vmatmul.mubr.f32.gmra.mrb[0].mxu0 %v1386
        %v1487 = vpop.f32.mrb[0].mxu0
        %v1488 = vadd.f32 %v1365, %v1487
        %v1489 = vpop.f32.mrb[0].mxu0
        %1490 = vmatprep.mubr.f32.mxu0 0.0
        %1491 = vmatmul.mubr.f32.gmra.mrb[0].mxu0 %v1389
        %v1492 = vpop.f32.mrb[0].mxu0
        %v1493 = vadd.f32 %v1365, %v1492
        %v1494 = vpop.f32.mrb[0].mxu0
        %1495 = vdwg.mxu0
        %vm1496 = vcmask 130048
        %1497 = vst.msk [vmem:[%s328] sm:$0xff] %vm1496, %v1458
        %1498 = vst.msk [vmem:[%s328 + $0x8] sm:$0xff] %vm1496, %v1463
        %1499 = vst.msk [vmem:[%s328 + $0x10] sm:$0xff] %vm1496, %v1468
        %1500 = vst.msk [vmem:[%s328 + $0x18] sm:$0xff] %vm1496, %v1473
        %1501 = vst.msk [vmem:[%s328 + $0x20] sm:$0xff] %vm1496, %v1478
        %1502 = vst.msk [vmem:[%s328 + $0x28] sm:$0xff] %vm1496, %v1483
        %1503 = vst.msk [vmem:[%s328 + $0x30] sm:$0xff] %vm1496, %v1488
        %1504 = vst.msk [vmem:[%s328 + $0x38] sm:$0xff] %vm1496, %v1493
        %s1505 = sand.u32 %s225, 1
        %s1506 = scalar_lea.sflag [#allocation4], %s1505
        %s1507 = sand.u32 %s225, 1
        %s1508 = smul.addr %s1507, 64
        %s1509 = scalar_lea.vmem [#allocation3], %s1508
        // Predicated region
        $region57: #{depth_wise_forward.1} parent=55 // pred_check
          %p1510 = pneg %p235
        $region58: #{depth_wise_forward.1} parent=55 // pred_check_branch
          %1512 = sbr.rel (%p1510) target = $region60
        $region59: #{depth_wise_forward.1} parent=55 // pred_region
          %s1514 = ssub.s32 1024, 1024
          %1515 = vsyncadd %s1506, %s1514
          %s1516 = smul.addr %s23, 8
          %s1517 = smul.addr %s1516, 128
          %s1518 = scalar_lea.hbm %s9, %s1517
          %s1519 = sshll.u32 %s1509, 4
          %s1520 = int_to_ptr.vmem [resolvable:$true] %s1519
          %1525 = dma.vmem_to_hbm [thread:$0]  %s1520, 1024, %s1518, %s1506, 128, 128, 8
        $region60: #{depth_wise_forward.1} parent=55 // pred_fallthru
          _
      $region56: #{depth_wise_forward.1} parent=5 // pred_fallthru
        _
      %p1526 = scmp.le.s32.totalorder 2, %s18
      // Predicated region
      $region61: #{depth_wise_forward.1} parent=5 // pred_check
        %p1527 = pneg %p1526
      $region62: #{depth_wise_forward.1} parent=5 // pred_check_branch
        %1529 = sbr.rel (%p1527) target = $region64
      $region63: #{depth_wise_forward.1} parent=5 // pred_region
        %s1530 = ssub.s32 %s18, 2
        // Predicated region
        $region65: #{depth_wise_forward.1} parent=63 // pred_check
          %p1531 = pneg %p241
        $region66: #{depth_wise_forward.1} parent=63 // pred_check_branch
          %1533 = sbr.rel (%p1531) target = $region68
        $region67: #{depth_wise_forward.1} parent=63 // pred_region
          %s1534 = sand.u32 %s226, 1
          %s1535 = scalar_lea.sflag [#allocation4], %s1534
          %s1536 = sand.u32 %s226, 1
          %s1537 = smul.addr %s1536, 64
          %s1538 = scalar_lea.vmem [#allocation3], %s1537
          %1539 = dma.done %s1535, 1024
        $region68: #{depth_wise_forward.1} parent=63 // pred_fallthru
          _
      $region64: #{depth_wise_forward.1} parent=5 // pred_fallthru
        _
    $region6: #{depth_wise_forward.1} parent=1 // loop_footer
      %s22 = sadd.s32 1, %s18
    $region7: #{depth_wise_forward.1} parent=1 // loop_footer_branch
      %17 = sbr.rel target = $region3
    $region8: #{depth_wise_forward.1} parent=1 // loop_exit
      _
    %1540 = vsyncpa [#allocation4], 1
    %s1541 = scalar_lea.sflag [#allocation4], 1
    %1542 = vsyncpa %s1541, 1

</llo_original>
